<compile_context>
chip_gen: v6e
topology: v6e:2x2x1
jax: 0.10.0
libtpu: 0.0.40
codegen_flags: <defaults>
</compile_context>

<pallas_src>
import math
import numpy as np
import jax
import jax.numpy as jnp
from jax.experimental import pallas as pl
from jax.experimental.pallas import tpu as pltpu

# ----- small, module-consistent sizes -----
B, S, D = 2, 8, 128          # batch, seqlen, dim
BS = B * S                   # batch folded into rows
H = 4                        # n_heads
HD = D // H                  # head_dim
R = 8                        # lora_r
LORA_ALPHA = 32
SCALING = LORA_ALPHA / R
MULTIPLE_OF = 128
EPS = 1e-6
LOG2_S = int(math.log2(S))
LOG2_BS = int(math.log2(BS))
LOG2_HD = int(math.log2(HD))
assert (1 << LOG2_S) == S and (1 << LOG2_BS) == BS and (1 << LOG2_HD) == HD
# FeedForward hidden dim, exactly as in the module __init__
HIDDEN = MULTIPLE_OF * ((int(2 * (4 * D) / 3) + MULTIPLE_OF - 1) // MULTIPLE_OF)  # 384


def transformer_block_kernel(x_ref, cosf_ref, sinf_ref,
                             wqkv_ref, wo_ref, w13_hbm, w2_hbm,
                             out_ref,
                             w13_ref, w2_ref, dma_sem):
    # ---- kick off the FFN weight DMA first: it overlaps the attention chain ----
    cp13 = pltpu.make_async_copy(w13_hbm, w13_ref, dma_sem.at[0])
    cp2 = pltpu.make_async_copy(w2_hbm, w2_ref, dma_sem.at[1])
    cp13.start()
    cp2.start()

    x = x_ref[...]                               # (BS, D) f32
    cosf = cosf_ref[...].astype(jnp.float32)     # (BS, D), stored bf16
    sinf = sinf_ref[...].astype(jnp.float32)

    def mm(a, b):           # a @ b, bf16 operands, f32 accumulation
        return jax.lax.dot_general(
            a.astype(jnp.bfloat16), b.astype(jnp.bfloat16),
            (((1,), (0,)), ((), ())), preferred_element_type=jnp.float32)

    def mm_t(a, b):         # a @ b.T
        return jax.lax.dot_general(
            a.astype(jnp.bfloat16), b.astype(jnp.bfloat16),
            (((1,), (1,)), ((), ())), preferred_element_type=jnp.float32)

    def rms(v):             # norm weight is folded into the following linear
        return v * jax.lax.rsqrt(jnp.mean(v * v, axis=-1, keepdims=True) + EPS)

    # ---- attention block ----
    xn = rms(x)
    # One wide matmul -> [q_perm | k_perm | v | rot_half(q_perm) | rot_half(k_perm)]
    # (1/sqrt(HD) is pre-folded into the q columns on the host.)
    qkv = mm(xn, wqkv_ref[...])                                   # (BS, 5*D) f32
    q = qkv[:, 0 * D:1 * D] * cosf + qkv[:, 3 * D:4 * D] * sinf   # RoPE, full width
    k = qkv[:, 1 * D:2 * D] * cosf + qkv[:, 4 * D:5 * D] * sinf
    v = qkv[:, 2 * D:3 * D]

    # Block-diagonal per-head packing of K and V: head h owns rows
    # [h*BS, (h+1)*BS) and cols [h*HD, (h+1)*HD) of a (H*BS, D) matrix.
    hrow = jax.lax.broadcasted_iota(jnp.int32, (H * BS, D), 0)
    hcol = jax.lax.broadcasted_iota(jnp.int32, (H * BS, D), 1)
    head_blk = (hrow >> LOG2_BS) == (hcol >> LOG2_HD)
    k_tiled = jnp.concatenate([k] * H, axis=0)        # sublane tiling, cheap copies
    v_tiled = jnp.concatenate([v] * H, axis=0)
    k_bd = jnp.where(head_blk, k_tiled, 0.0)
    v_bd = jnp.where(head_blk, v_tiled, 0.0)
    d_bd = head_blk.astype(jnp.float32)               # per-head denom broadcast matrix

    # Block-diagonal causal mask (batch folded), tiled per head along lanes:
    # score[i, h*BS + j] is valid iff query token i and key token j are in the
    # same sequence and j <= i.  Generated in-kernel (no mask DMA).
    srow = jax.lax.broadcasted_iota(jnp.int32, (BS, H * BS), 0)
    scol = jax.lax.broadcasted_iota(jnp.int32, (BS, H * BS), 1) & (BS - 1)
    valid = ((srow >> LOG2_S) == (scol >> LOG2_S)) & (srow >= scol)
    neg_mask = jnp.where(valid, 0.0, -1e9).astype(jnp.float32)

    # All H heads' scores in one MXU push: (BS, D) @ (H*BS, D)^T -> (BS, H*BS).
    s = mm_t(q, k_bd) + neg_mask
    # Subtracting the global row max is valid per 16-lane head segment too.
    p = jnp.exp(s - jnp.max(s, axis=-1, keepdims=True))
    # Unnormalized context and per-head denominator, each one MXU push.
    ctx = mm(p, v_bd) * pl.reciprocal(mm(p, d_bd), approx=True)   # (BS, D)
    h_res = x + mm(ctx, wo_ref[...])

    # ---- feed-forward block (SwiGLU), w1/w3 fused ----
    hn = rms(h_res)
    cp13.wait()                                        # FFN weights now resident
    gu = mm(hn, w13_ref[...])                          # (BS, 2*HIDDEN)
    g = gu[:, :HIDDEN]
    u = gu[:, HIDDEN:]
    cp2.wait()
    out_ref[...] = h_res + mm(g * jax.nn.sigmoid(g) * u, w2_ref[...])


def transformer_block(x, cosf, sinf, wqkv, wo, w13, w2):
    def full(shape):
        return pl.BlockSpec(shape, lambda i, _s=shape: (0,) * len(_s))

    xf = x.reshape(BS, D)
    out = pl.pallas_call(
        transformer_block_kernel,
        out_shape=jax.ShapeDtypeStruct((BS, D), jnp.float32),
        grid=(1,),
        in_specs=[
            full((BS, D)), full((BS, D)), full((BS, D)),      # x, cos_full, sin_full
            full((D, 5 * D)),                                  # fused qkv(+rot) weight
            full((D, D)),                                      # wo (LoRA folded)
            pl.BlockSpec(memory_space=pl.ANY),                 # w13 stays in HBM
            pl.BlockSpec(memory_space=pl.ANY),                 # w2 stays in HBM
        ],
        out_specs=full((BS, D)),
        scratch_shapes=[
            pltpu.VMEM((D, 2 * HIDDEN), jnp.bfloat16),         # w13 landing buffer
            pltpu.VMEM((HIDDEN, D), jnp.bfloat16),             # w2 landing buffer
            pltpu.SemaphoreType.DMA((2,)),
        ],
        compiler_params=pltpu.CompilerParams(dimension_semantics=("arbitrary",)),
    )(xf, cosf, sinf, wqkv, wo, w13, w2)
    return out.reshape(B, S, D)


def reference(x, mask, cos, sin, p):
    """Pure-JAX port of the PyTorch forward (interleaved-complex RoPE)."""
    (attn_nw, ffn_nw, wq, wk, wv, wo,
     wqA, wqB, wkA, wkB, wvA, wvB, woA, woB, w1, w2, w3) = p

    def rms(v, w):
        return v * jax.lax.rsqrt(jnp.mean(v * v, -1, keepdims=True) + EPS) * w

    def rope(t):  # t: (B, S, H, HD), interleaved (real, imag) pairs
        tr = t.reshape(B, S, H, HD // 2, 2)
        xr, xi = tr[..., 0], tr[..., 1]
        c = cos[None, :, None, :]
        s = sin[None, :, None, :]
        return jnp.stack([xr * c - xi * s, xr * s + xi * c], axis=-1).reshape(B, S, H, HD)

    xn = rms(x, attn_nw)
    xq = xn @ wq + (xn @ wqA) @ wqB * SCALING
    xk = xn @ wk + (xn @ wkA) @ wkB * SCALING
    xv = xn @ wv + (xn @ wvA) @ wvB * SCALING
    q = rope(xq.reshape(B, S, H, HD)).transpose(0, 2, 1, 3)
    k = rope(xk.reshape(B, S, H, HD)).transpose(0, 2, 1, 3)
    v = xv.reshape(B, S, H, HD).transpose(0, 2, 1, 3)
    sc = jnp.einsum('bhqd,bhkd->bhqk', q, k) / math.sqrt(HD) + mask
    pw = jax.nn.softmax(sc, axis=-1)
    o = jnp.einsum('bhqk,bhkd->bhqd', pw, v).transpose(0, 2, 1, 3).reshape(B, S, D)
    attn = o @ wo + (o @ woA) @ woB * SCALING
    h = x + attn
    hn = rms(h, ffn_nw)
    return h + (jax.nn.silu(hn @ w1) * (hn @ w3)) @ w2


if __name__ == "__main__":
    key = jax.random.PRNGKey(0)
    keys = jax.random.split(key, 18)
    ws = 0.05   # weight scale

    x = jax.random.normal(keys[0], (B, S, D), jnp.float32)
    # Linear weights stored pre-transposed (in_dim, out_dim) so forward is x @ W.
    wq = jax.random.normal(keys[1], (D, D), jnp.float32) * ws
    wk = jax.random.normal(keys[2], (D, D), jnp.float32) * ws
    wv = jax.random.normal(keys[3], (D, D), jnp.float32) * ws
    wo = jax.random.normal(keys[4], (D, D), jnp.float32) * ws
    wqA = jax.random.normal(keys[5], (D, R), jnp.float32) * ws
    wqB = jax.random.normal(keys[6], (R, D), jnp.float32) * 0.02   # nonzero LoRA path
    wkA = jax.random.normal(keys[7], (D, R), jnp.float32) * ws
    wkB = jax.random.normal(keys[8], (R, D), jnp.float32) * 0.02
    wvA = jax.random.normal(keys[9], (D, R), jnp.float32) * ws
    wvB = jax.random.normal(keys[10], (R, D), jnp.float32) * 0.02
    woA = jax.random.normal(keys[11], (D, R), jnp.float32) * ws
    woB = jax.random.normal(keys[12], (R, D), jnp.float32) * 0.02
    w1 = jax.random.normal(keys[13], (D, HIDDEN), jnp.float32) * ws
    w2 = jax.random.normal(keys[14], (HIDDEN, D), jnp.float32) * ws
    w3 = jax.random.normal(keys[15], (D, HIDDEN), jnp.float32) * ws
    # RMSNorm weights (module inits to ones; perturb to exercise the norm-weight fold)
    attn_nw = 1.0 + 0.1 * jax.random.normal(keys[16], (1, D), jnp.float32)
    ffn_nw = 1.0 + 0.1 * jax.random.normal(keys[17], (1, D), jnp.float32)

    # RoPE tables (theta = 10000), equivalent to LLaMA precompute_freqs_cis.
    inv_freq = 1.0 / (10000.0 ** (np.arange(0, HD, 2, dtype=np.float64) / HD))
    ang = np.outer(np.arange(S), inv_freq)
    cos = jnp.asarray(np.cos(ang), jnp.float32)   # (S, HD//2)
    sin = jnp.asarray(np.sin(ang), jnp.float32)

    # causal attention mask for the reference (broadcasts over batch & heads)
    mask = jnp.where(jnp.asarray(np.tril(np.ones((S, S), bool))), 0.0, -1e9).astype(jnp.float32)

    # ---------------- host-side weight preparation for the kernel ----------------
    # 1) fold LoRA into the dense weights (eval mode: dropout == identity)
    wq_eff = wq + SCALING * (wqA @ wqB)
    wk_eff = wk + SCALING * (wkA @ wkB)
    wv_eff = wv + SCALING * (wvA @ wvB)
    wo_eff = wo + SCALING * (woA @ woB)

    # 2) per-head column permutation: interleaved (r0,i0,...) -> [reals | imags];
    #    fold 1/sqrt(head_dim) into the q columns (not k) so the kernel score
    #    line has no extra multiply.
    perm = np.concatenate([
        np.concatenate([np.arange(h * HD, (h + 1) * HD, 2),
                        np.arange(h * HD + 1, (h + 1) * HD, 2)])
        for h in range(H)
    ])
    inv_sqrt = 1.0 / math.sqrt(HD)
    wq_p = wq_eff[:, perm] * inv_sqrt
    wk_p = wk_eff[:, perm]

    # 3) rotate-half folded into extra weight columns: rot(x@W) = x@(signed col-perm of W)
    rot_src = np.zeros(D, np.int32)
    rot_sign = np.zeros(D, np.float32)
    for h in range(H):
        for c in range(HD // 2):
            rcol = h * HD + c
            icol = h * HD + HD // 2 + c
            rot_src[rcol], rot_sign[rcol] = icol, -1.0   # out_real uses -imag
            rot_src[icol], rot_sign[icol] = rcol, 1.0    # out_imag uses +real
    rot_sign_j = jnp.asarray(rot_sign)
    wq_rot = wq_p[:, rot_src] * rot_sign_j               # inherits the 1/sqrt(HD) scale
    wk_rot = wk_p[:, rot_src] * rot_sign_j

    # 4) fuse qkv(+rot) / w1|w3, fold RMSNorm weights into the rows, cast to bf16
    wqkv = jnp.concatenate([wq_p, wk_p, wv_eff, wq_rot, wk_rot], axis=1)
    wqkv = (attn_nw.reshape(D, 1) * wqkv).astype(jnp.bfloat16)       # (D, 5D)
    w13 = (ffn_nw.reshape(D, 1) * jnp.concatenate([w1, w3], axis=1)).astype(jnp.bfloat16)
    wo_b = wo_eff.astype(jnp.bfloat16)
    w2_b = w2.astype(jnp.bfloat16)

    # 5) full-width cos/sin tables matching the [reals|imags] column layout,
    #    tiled over heads (lanes) and batch (rows): (BS, D), stored bf16 to
    #    halve activation DMA (upcast to f32 in-kernel).
    base_cos = np.concatenate([np.asarray(cos), np.asarray(cos)], axis=1)   # (S, HD)
    base_sin = np.concatenate([np.asarray(sin), np.asarray(sin)], axis=1)
    cosf = jnp.asarray(np.tile(base_cos, (B, H)), jnp.bfloat16)              # (BS, D)
    sinf = jnp.asarray(np.tile(base_sin, (B, H)), jnp.bfloat16)

    out = transformer_block(x, cosf, sinf, wqkv, wo_b, w13, w2_b)
    out = jax.block_until_ready(out)

    ref = reference(x, mask, cos, sin,
                    (attn_nw, ffn_nw, wq, wk, wv, wo,
                     wqA, wqB, wkA, wkB, wvA, wvB, woA, woB, w1, w2, w3))
    np.testing.assert_allclose(np.asarray(out), np.asarray(ref), rtol=2e-2, atol=2e-2)

    print("KERNEL_OK")
</pallas_src>

<mosaic_0001>
module attributes {stable_mosaic.version = 11 : i64} {
  func.func @transformer_block_kernel(%arg0: i32, %arg1: memref<16x128xf32, #tpu.memory_space<vmem>>, %arg2: memref<16x128xbf16, #tpu.memory_space<vmem>>, %arg3: memref<16x128xbf16, #tpu.memory_space<vmem>>, %arg4: memref<128x640xbf16, #tpu.memory_space<vmem>>, %arg5: memref<128x128xbf16, #tpu.memory_space<vmem>>, %arg6: memref<128x768xbf16, #tpu.memory_space<any>>, %arg7: memref<384x128xbf16, #tpu.memory_space<any>>, %arg8: memref<16x128xf32, #tpu.memory_space<vmem>>, %arg9: memref<128x768xbf16, #tpu.memory_space<vmem>>, %arg10: memref<384x128xbf16, #tpu.memory_space<vmem>>, %arg11: memref<2x!tpu.dma_semaphore, #tpu.memory_space<semaphore_mem>>) attributes {dimension_semantics = [#tpu.dimension_semantics<arbitrary>], iteration_bounds = array<i64: 1>, scalar_prefetch = 0 : i64, scratch_operands = 3 : i64, tpu.core_type = #tpu.core_type<tc>, window_params = [{pipeline_mode = #tpu.pipeline_mode<synchronous>, transform_indices = @transform_0, window_bounds = array<i64: 16, 128>}, {pipeline_mode = #tpu.pipeline_mode<synchronous>, transform_indices = @transform_1, window_bounds = array<i64: 16, 128>}, {pipeline_mode = #tpu.pipeline_mode<synchronous>, transform_indices = @transform_2, window_bounds = array<i64: 16, 128>}, {pipeline_mode = #tpu.pipeline_mode<synchronous>, transform_indices = @transform_3, window_bounds = array<i64: 128, 640>}, {pipeline_mode = #tpu.pipeline_mode<synchronous>, transform_indices = @transform_4, window_bounds = array<i64: 128, 128>}, {}, {}, {pipeline_mode = #tpu.pipeline_mode<synchronous>, transform_indices = @transform_7, window_bounds = array<i64: 16, 128>}]} {
    %c0_i32 = arith.constant 0 : i32
    %0 = tpu.memref_slice %arg11[%c0_i32] : memref<2x!tpu.dma_semaphore, #tpu.memory_space<semaphore_mem>> -> memref<1x!tpu.dma_semaphore, #tpu.memory_space<semaphore_mem>>
    %1 = tpu.memref_squeeze %0 : memref<1x!tpu.dma_semaphore, #tpu.memory_space<semaphore_mem>> -> memref<!tpu.dma_semaphore, #tpu.memory_space<semaphore_mem>>
    tpu.enqueue_dma source(%arg6 : memref<128x768xbf16, #tpu.memory_space<any>>) target(%arg9 : memref<128x768xbf16, #tpu.memory_space<vmem>>) target_semaphore(%1 : memref<!tpu.dma_semaphore, #tpu.memory_space<semaphore_mem>>)
    %c1_i32 = arith.constant 1 : i32
    %2 = tpu.memref_slice %arg11[%c1_i32] : memref<2x!tpu.dma_semaphore, #tpu.memory_space<semaphore_mem>> -> memref<1x!tpu.dma_semaphore, #tpu.memory_space<semaphore_mem>>
    %3 = tpu.memref_squeeze %2 : memref<1x!tpu.dma_semaphore, #tpu.memory_space<semaphore_mem>> -> memref<!tpu.dma_semaphore, #tpu.memory_space<semaphore_mem>>
    tpu.enqueue_dma source(%arg7 : memref<384x128xbf16, #tpu.memory_space<any>>) target(%arg10 : memref<384x128xbf16, #tpu.memory_space<vmem>>) target_semaphore(%3 : memref<!tpu.dma_semaphore, #tpu.memory_space<semaphore_mem>>)
    %c0 = arith.constant 0 : index
    %c0_0 = arith.constant 0 : index
    %4 = vector.load %arg1[%c0, %c0_0] : memref<16x128xf32, #tpu.memory_space<vmem>>, vector<16x128xf32>
    %c0_1 = arith.constant 0 : index
    %c0_2 = arith.constant 0 : index
    %5 = vector.load %arg2[%c0_1, %c0_2] : memref<16x128xbf16, #tpu.memory_space<vmem>>, vector<16x128xbf16>
    %6 = arith.extf %5 : vector<16x128xbf16> to vector<16x128xf32>
    %c0_3 = arith.constant 0 : index
    %c0_4 = arith.constant 0 : index
    %7 = vector.load %arg3[%c0_3, %c0_4] : memref<16x128xbf16, #tpu.memory_space<vmem>>, vector<16x128xbf16>
    %8 = arith.extf %7 : vector<16x128xbf16> to vector<16x128xf32>
    %9 = arith.mulf %4, %4 : vector<16x128xf32>
    %cst = arith.constant dense<0.000000e+00> : vector<16xf32>
    %10 = vector.multi_reduction <add>, %9, %cst [1] : vector<16x128xf32> to vector<16xf32>
    %11 = vector.shape_cast %10 : vector<16xf32> to vector<16x1xf32>
    %cst_5 = arith.constant 1.280000e+02 : f32
    %12 = vector.broadcast %cst_5 : f32 to vector<16x1xf32>
    %13 = arith.divf %11, %12 : vector<16x1xf32>
    %cst_6 = arith.constant 9.99999997E-7 : f32
    %14 = vector.broadcast %cst_6 : f32 to vector<16x1xf32>
    %15 = arith.addf %13, %14 : vector<16x1xf32>
    %16 = math.rsqrt %15 : vector<16x1xf32>
    %17 = vector.broadcast %16 : vector<16x1xf32> to vector<16x128xf32>
    %18 = arith.mulf %4, %17 : vector<16x128xf32>
    %c0_7 = arith.constant 0 : index
    %c0_8 = arith.constant 0 : index
    %19 = vector.load %arg4[%c0_7, %c0_8] : memref<128x640xbf16, #tpu.memory_space<vmem>>, vector<128x640xbf16>
    %20 = arith.truncf %18 : vector<16x128xf32> to vector<16x128xbf16>
    %cst_9 = arith.constant dense<0.000000e+00> : vector<16x640xf32>
    %21 = tpu.matmul %20, %19, %cst_9 {dimension_numbers = #tpu.dot_dimension_numbers<[1], [0], [0], [1], [0, 0, 1, 1], [], []>} : vector<16x128xbf16>, vector<128x640xbf16>, vector<16x640xf32> -> vector<16x640xf32>
    %22 = vector.extract_strided_slice %21 {offsets = [0, 0], sizes = [16, 128], strides = [1, 1]} : vector<16x640xf32> to vector<16x128xf32>
    %23 = arith.mulf %22, %6 : vector<16x128xf32>
    %24 = vector.extract_strided_slice %21 {offsets = [0, 384], sizes = [16, 128], strides = [1, 1]} : vector<16x640xf32> to vector<16x128xf32>
    %25 = arith.mulf %24, %8 : vector<16x128xf32>
    %26 = arith.addf %23, %25 : vector<16x128xf32>
    %27 = vector.extract_strided_slice %21 {offsets = [0, 128], sizes = [16, 128], strides = [1, 1]} : vector<16x640xf32> to vector<16x128xf32>
    %28 = arith.mulf %27, %6 : vector<16x128xf32>
    %29 = vector.extract_strided_slice %21 {offsets = [0, 512], sizes = [16, 128], strides = [1, 1]} : vector<16x640xf32> to vector<16x128xf32>
    %30 = arith.mulf %29, %8 : vector<16x128xf32>
    %31 = arith.addf %28, %30 : vector<16x128xf32>
    %32 = vector.extract_strided_slice %21 {offsets = [0, 256], sizes = [16, 128], strides = [1, 1]} : vector<16x640xf32> to vector<16x128xf32>
    %33 = tpu.iota {dimensions = array<i32: 0>} : vector<64x128xi32>
    %34 = tpu.iota {dimensions = array<i32: 1>} : vector<64x128xi32>
    %c4_i32 = arith.constant 4 : i32
    %35 = vector.broadcast %c4_i32 : i32 to vector<64x128xi32>
    %36 = arith.shrsi %33, %35 : vector<64x128xi32>
    %c5_i32 = arith.constant 5 : i32
    %37 = vector.broadcast %c5_i32 : i32 to vector<64x128xi32>
    %38 = arith.shrsi %34, %37 : vector<64x128xi32>
    %39 = arith.cmpi eq, %36, %38 : vector<64x128xi32>
    %40 = tpu.concatenate %31, %31, %31, %31 in 0 : vector<16x128xf32>, vector<16x128xf32>, vector<16x128xf32>, vector<16x128xf32> -> vector<64x128xf32>
    %41 = tpu.concatenate %32, %32, %32, %32 in 0 : vector<16x128xf32>, vector<16x128xf32>, vector<16x128xf32>, vector<16x128xf32> -> vector<64x128xf32>
    %cst_10 = arith.constant 0.000000e+00 : f32
    %42 = vector.broadcast %cst_10 : f32 to vector<64x128xf32>
    %43 = arith.select %39, %40, %42 : vector<64x128xi1>, vector<64x128xf32>
    %cst_11 = arith.constant 0.000000e+00 : f32
    %44 = vector.broadcast %cst_11 : f32 to vector<64x128xf32>
    %45 = arith.select %39, %41, %44 : vector<64x128xi1>, vector<64x128xf32>
    %46 = arith.extui %39 : vector<64x128xi1> to vector<64x128xi32>
    %47 = arith.sitofp %46 : vector<64x128xi32> to vector<64x128xf32>
    %48 = tpu.iota {dimensions = array<i32: 0>} : vector<16x64xi32>
    %49 = tpu.iota {dimensions = array<i32: 1>} : vector<16x64xi32>
    %c15_i32 = arith.constant 15 : i32
    %50 = vector.broadcast %c15_i32 : i32 to vector<16x64xi32>
    %51 = arith.andi %49, %50 : vector<16x64xi32>
    %c3_i32 = arith.constant 3 : i32
    %52 = vector.broadcast %c3_i32 : i32 to vector<16x64xi32>
    %53 = arith.shrsi %48, %52 : vector<16x64xi32>
    %c3_i32_12 = arith.constant 3 : i32
    %54 = vector.broadcast %c3_i32_12 : i32 to vector<16x64xi32>
    %55 = arith.shrsi %51, %54 : vector<16x64xi32>
    %56 = arith.cmpi eq, %53, %55 : vector<16x64xi32>
    %57 = arith.cmpi sge, %48, %51 : vector<16x64xi32>
    %58 = arith.andi %56, %57 : vector<16x64xi1>
    %cst_13 = arith.constant 0.000000e+00 : f32
    %cst_14 = arith.constant -1.000000e+09 : f32
    %59 = vector.broadcast %cst_13 : f32 to vector<16x64xf32>
    %60 = vector.broadcast %cst_14 : f32 to vector<16x64xf32>
    %61 = arith.select %58, %59, %60 : vector<16x64xi1>, vector<16x64xf32>
    %62 = arith.truncf %26 : vector<16x128xf32> to vector<16x128xbf16>
    %63 = arith.truncf %43 : vector<64x128xf32> to vector<64x128xbf16>
    %cst_15 = arith.constant dense<0.000000e+00> : vector<16x64xf32>
    %64 = tpu.matmul %62, %63, %cst_15 {dimension_numbers = #tpu.dot_dimension_numbers<[1], [1], [0], [0], [0, 0, 1, 0], [], []>} : vector<16x128xbf16>, vector<64x128xbf16>, vector<16x64xf32> -> vector<16x64xf32>
    %65 = arith.addf %64, %61 : vector<16x64xf32>
    %cst_16 = arith.constant dense<0xFF800000> : vector<16xf32>
    %66 = vector.multi_reduction <maximumf>, %65, %cst_16 [1] : vector<16x64xf32> to vector<16xf32>
    %67 = vector.shape_cast %66 : vector<16xf32> to vector<16x1xf32>
    %68 = vector.broadcast %67 : vector<16x1xf32> to vector<16x64xf32>
    %69 = arith.subf %65, %68 : vector<16x64xf32>
    %70 = math.exp %69 : vector<16x64xf32>
    %71 = arith.truncf %70 : vector<16x64xf32> to vector<16x64xbf16>
    %72 = arith.truncf %45 : vector<64x128xf32> to vector<64x128xbf16>
    %cst_17 = arith.constant dense<0.000000e+00> : vector<16x128xf32>
    %73 = tpu.matmul %71, %72, %cst_17 {dimension_numbers = #tpu.dot_dimension_numbers<[1], [0], [0], [1], [0, 0, 1, 1], [], []>} : vector<16x64xbf16>, vector<64x128xbf16>, vector<16x128xf32> -> vector<16x128xf32>
    %74 = arith.truncf %70 : vector<16x64xf32> to vector<16x64xbf16>
    %75 = arith.truncf %47 : vector<64x128xf32> to vector<64x128xbf16>
    %cst_18 = arith.constant dense<0.000000e+00> : vector<16x128xf32>
    %76 = tpu.matmul %74, %75, %cst_18 {dimension_numbers = #tpu.dot_dimension_numbers<[1], [0], [0], [1], [0, 0, 1, 1], [], []>} : vector<16x64xbf16>, vector<64x128xbf16>, vector<16x128xf32> -> vector<16x128xf32>
    %77 = tpu.reciprocal %76 {approx = true} : vector<16x128xf32> -> vector<16x128xf32>
    %78 = arith.mulf %73, %77 : vector<16x128xf32>
    %c0_19 = arith.constant 0 : index
    %c0_20 = arith.constant 0 : index
    %79 = vector.load %arg5[%c0_19, %c0_20] : memref<128x128xbf16, #tpu.memory_space<vmem>>, vector<128x128xbf16>
    %80 = arith.truncf %78 : vector<16x128xf32> to vector<16x128xbf16>
    %cst_21 = arith.constant dense<0.000000e+00> : vector<16x128xf32>
    %81 = tpu.matmul %80, %79, %cst_21 {dimension_numbers = #tpu.dot_dimension_numbers<[1], [0], [0], [1], [0, 0, 1, 1], [], []>} : vector<16x128xbf16>, vector<128x128xbf16>, vector<16x128xf32> -> vector<16x128xf32>
    %82 = arith.addf %4, %81 : vector<16x128xf32>
    %83 = arith.mulf %82, %82 : vector<16x128xf32>
    %cst_22 = arith.constant dense<0.000000e+00> : vector<16xf32>
    %84 = vector.multi_reduction <add>, %83, %cst_22 [1] : vector<16x128xf32> to vector<16xf32>
    %85 = vector.shape_cast %84 : vector<16xf32> to vector<16x1xf32>
    %cst_23 = arith.constant 1.280000e+02 : f32
    %86 = vector.broadcast %cst_23 : f32 to vector<16x1xf32>
    %87 = arith.divf %85, %86 : vector<16x1xf32>
    %cst_24 = arith.constant 9.99999997E-7 : f32
    %88 = vector.broadcast %cst_24 : f32 to vector<16x1xf32>
    %89 = arith.addf %87, %88 : vector<16x1xf32>
    %90 = math.rsqrt %89 : vector<16x1xf32>
    %91 = vector.broadcast %90 : vector<16x1xf32> to vector<16x128xf32>
    %92 = arith.mulf %82, %91 : vector<16x128xf32>
    %c0_i32_25 = arith.constant 0 : i32
    %93 = tpu.memref_slice %arg11[%c0_i32_25] : memref<2x!tpu.dma_semaphore, #tpu.memory_space<semaphore_mem>> -> memref<1x!tpu.dma_semaphore, #tpu.memory_space<semaphore_mem>>
    %94 = tpu.memref_squeeze %93 : memref<1x!tpu.dma_semaphore, #tpu.memory_space<semaphore_mem>> -> memref<!tpu.dma_semaphore, #tpu.memory_space<semaphore_mem>>
    tpu.wait_dma2 semaphore(%94 : memref<!tpu.dma_semaphore, #tpu.memory_space<semaphore_mem>>) src(%arg6 : memref<128x768xbf16, #tpu.memory_space<any>>) dst(%arg9 : memref<128x768xbf16, #tpu.memory_space<vmem>>)
    %c0_26 = arith.constant 0 : index
    %c0_27 = arith.constant 0 : index
    %95 = vector.load %arg9[%c0_26, %c0_27] : memref<128x768xbf16, #tpu.memory_space<vmem>>, vector<128x768xbf16>
    %96 = arith.truncf %92 : vector<16x128xf32> to vector<16x128xbf16>
    %cst_28 = arith.constant dense<0.000000e+00> : vector<16x768xf32>
    %97 = tpu.matmul %96, %95, %cst_28 {dimension_numbers = #tpu.dot_dimension_numbers<[1], [0], [0], [1], [0, 0, 1, 1], [], []>} : vector<16x128xbf16>, vector<128x768xbf16>, vector<16x768xf32> -> vector<16x768xf32>
    %98 = vector.extract_strided_slice %97 {offsets = [0, 0], sizes = [16, 384], strides = [1, 1]} : vector<16x768xf32> to vector<16x384xf32>
    %99 = vector.extract_strided_slice %97 {offsets = [0, 384], sizes = [16, 384], strides = [1, 1]} : vector<16x768xf32> to vector<16x384xf32>
    %c1_i32_29 = arith.constant 1 : i32
    %100 = tpu.memref_slice %arg11[%c1_i32_29] : memref<2x!tpu.dma_semaphore, #tpu.memory_space<semaphore_mem>> -> memref<1x!tpu.dma_semaphore, #tpu.memory_space<semaphore_mem>>
    %101 = tpu.memref_squeeze %100 : memref<1x!tpu.dma_semaphore, #tpu.memory_space<semaphore_mem>> -> memref<!tpu.dma_semaphore, #tpu.memory_space<semaphore_mem>>
    tpu.wait_dma2 semaphore(%101 : memref<!tpu.dma_semaphore, #tpu.memory_space<semaphore_mem>>) src(%arg7 : memref<384x128xbf16, #tpu.memory_space<any>>) dst(%arg10 : memref<384x128xbf16, #tpu.memory_space<vmem>>)
    %102 = arith.negf %98 : vector<16x384xf32>
    %103 = math.exp %102 : vector<16x384xf32>
    %cst_30 = arith.constant 1.000000e+00 : f32
    %104 = vector.broadcast %cst_30 : f32 to vector<16x384xf32>
    %105 = arith.addf %104, %103 : vector<16x384xf32>
    %106 = arith.divf %104, %105 : vector<16x384xf32>
    %107 = arith.mulf %98, %106 : vector<16x384xf32>
    %108 = arith.mulf %107, %99 : vector<16x384xf32>
    %c0_31 = arith.constant 0 : index
    %c0_32 = arith.constant 0 : index
    %109 = vector.load %arg10[%c0_31, %c0_32] : memref<384x128xbf16, #tpu.memory_space<vmem>>, vector<384x128xbf16>
    %110 = arith.truncf %108 : vector<16x384xf32> to vector<16x384xbf16>
    %cst_33 = arith.constant dense<0.000000e+00> : vector<16x128xf32>
    %111 = tpu.matmul %110, %109, %cst_33 {dimension_numbers = #tpu.dot_dimension_numbers<[1], [0], [0], [1], [0, 0, 1, 1], [], []>} : vector<16x384xbf16>, vector<384x128xbf16>, vector<16x128xf32> -> vector<16x128xf32>
    %112 = arith.addf %82, %111 : vector<16x128xf32>
    %c0_34 = arith.constant 0 : index
    %c0_35 = arith.constant 0 : index
    %113 = vector.load %arg8[%c0_34, %c0_35] : memref<16x128xf32, #tpu.memory_space<vmem>>, vector<16x128xf32>
    tpu.vector_store %arg8[%c0_34, %c0_35], %112 {strides = array<i32>} : memref<16x128xf32, #tpu.memory_space<vmem>>, vector<16x128xf32>,
    return
  }
  func.func @transform_0(%arg0: i32) -> (i32, i32) {
    %c0_i32 = arith.constant 0 : i32
    %c0_i32_0 = arith.constant 0 : i32
    %c0_i32_1 = arith.constant 0 : i32
    return %c0_i32, %c0_i32_0 : i32, i32
  }
  func.func @transform_1(%arg0: i32) -> (i32, i32) {
    %c0_i32 = arith.constant 0 : i32
    %c0_i32_0 = arith.constant 0 : i32
    %c0_i32_1 = arith.constant 0 : i32
    return %c0_i32, %c0_i32_0 : i32, i32
  }
  func.func @transform_2(%arg0: i32) -> (i32, i32) {
    %c0_i32 = arith.constant 0 : i32
    %c0_i32_0 = arith.constant 0 : i32
    %c0_i32_1 = arith.constant 0 : i32
    return %c0_i32, %c0_i32_0 : i32, i32
  }
  func.func @transform_3(%arg0: i32) -> (i32, i32) {
    %c0_i32 = arith.constant 0 : i32
    %c0_i32_0 = arith.constant 0 : i32
    %c0_i32_1 = arith.constant 0 : i32
    return %c0_i32, %c0_i32_0 : i32, i32
  }
  func.func @transform_4(%arg0: i32) -> (i32, i32) {
    %c0_i32 = arith.constant 0 : i32
    %c0_i32_0 = arith.constant 0 : i32
    %c0_i32_1 = arith.constant 0 : i32
    return %c0_i32, %c0_i32_0 : i32, i32
  }
  func.func @transform_7(%arg0: i32) -> (i32, i32) {
    %c0_i32 = arith.constant 0 : i32
    %c0_i32_0 = arith.constant 0 : i32
    %c0_i32_1 = arith.constant 0 : i32
    return %c0_i32, %c0_i32_0 : i32, i32
  }
}

</mosaic_0001>

<llo_original>
// kernel: tpu_custom_call.1
$region0: #{tpu_custom_call.1}
  #allocation0 [shape = 'u32[]', space=smem, size = 0x4, offset = 0x4, fixed_abs, tag = 'smem constant byte address 0x4 - core index']
  #allocation1 [shape = 'u32[144,128]{1,0:T(1,128)}', space=vmem, size = 0x12000, scoped, tag = 'internal scratch']
  #allocation2 [shape = 'bf16[128,768]{1,0:T(8,128)(2,1)}', space=vmem, size = 0x30000, scoped, tag = 'scratch operand']
  #allocation3 [shape = 'bf16[384,128]{1,0:T(8,128)(2,1)}', space=vmem, size = 0x18000, scoped, tag = 'scratch operand']
  #allocation4 [shape = 's32[2]{0}', space=sflag, size = 0x8, scoped, tag = 'scratch operand']
  #allocation15 [shape = 's32[]', space=sflag, size = 0x4, offset = 0, fixed_abs, tag = 'sflag constant byte address 0x0 - dummy sync flag']
  #allocation16 [shape = 's32[]', space=sflag, size = 0x4, offset = 0, fixed_abs, tag = 'sflag constant byte address 0x0 - dummy sync flag']
  #allocation17 [shape = 'u32[]', space=smem, size = 0x4, offset = 0x44, fixed_abs, tag = 'smem constant byte address 0x44 - assertion arg 0']
  #allocation18 [shape = 'u32[]', space=smem, size = 0x4, offset = 0x48, fixed_abs, tag = 'smem constant byte address 0x48 - assertion arg 1']
  #allocation19 [shape = 's32[]', space=sflag, size = 0x4, offset = 0, fixed_abs, tag = 'sflag constant byte address 0x0 - dummy sync flag']
  #allocation20 [shape = 's32[]', space=sflag, size = 0x4, offset = 0, fixed_abs, tag = 'sflag constant byte address 0x0 - dummy sync flag']
  %s0 = inlined_call_operand.hbm [shape: f32[16,128], index: 0, kind: input, shape index: {}]
  %s1 = inlined_call_operand.hbm [shape: bf16[16,128], index: 1, kind: input, shape index: {}]
  %s2 = inlined_call_operand.hbm [shape: bf16[16,128], index: 2, kind: input, shape index: {}]
  %s3 = inlined_call_operand.hbm [shape: bf16[128,640], index: 3, kind: input, shape index: {}]
  %s4 = inlined_call_operand.hbm [shape: bf16[128,128], index: 4, kind: input, shape index: {}]
  %s5 = inlined_call_operand.hbm [shape: bf16[128,768], index: 5, kind: input, shape index: {}]
  %s6 = inlined_call_operand.hbm [shape: bf16[384,128], index: 6, kind: input, shape index: {}]
  %s7 = inlined_call_operand.hbm [shape: f32[16,128], index: 7, kind: output, shape index: {}]
  %s8 = sld [smem:[#allocation0]]
  $region58: #{tpu_custom_call.1} parent=0
    _
  %s10 = ssub.s32 1, %s8
  %s11 = scalar_select 0, %s10, %s8
  $region1: #{tpu_custom_call.1} parent=0
    #allocation5 [shape = 'u8[8192]{0}', space=vmem, size = 0x2000, scoped, tag = 'input window, operand 0, single buffered']
    #allocation6 [shape = 's32[1]{0}', space=sflag, size = 0x4, scoped, tag = 'scoped memory for tpu_custom_call.1']
    #allocation7 [shape = 's32[1]{0}', space=sflag, size = 0x4, scoped, tag = 'scoped memory for tpu_custom_call.1']
    #allocation8 [shape = 'u8[4096]{0}', space=vmem, size = 0x1000, scoped, tag = 'input window, operand 1, single buffered']
    #allocation9 [shape = 's32[1]{0}', space=sflag, size = 0x4, scoped, tag = 'scoped memory for tpu_custom_call.1']
    #allocation10 [shape = 'u8[4096]{0}', space=vmem, size = 0x1000, scoped, tag = 'input window, operand 2, single buffered']
    #allocation11 [shape = 'u8[163840]{0}', space=vmem, size = 0x28000, scoped, tag = 'input window, operand 3, single buffered']
    #allocation12 [shape = 's32[1]{0}', space=sflag, size = 0x4, scoped, tag = 'scoped memory for tpu_custom_call.1']
    #allocation13 [shape = 'u8[32768]{0}', space=vmem, size = 0x8000, scoped, tag = 'input window, operand 4, single buffered']
    #allocation14 [shape = 'u8[8192]{0}', space=vmem, size = 0x2000, scoped, tag = 'output window, operand 0, single buffered']
    %12 = vsyncpa [#allocation6], 0
    %13 = vsyncpa [#allocation9], 0
    %14 = vsyncpa [#allocation12], 0
    %15 = vsyncpa [#allocation7], 0
    // Predicated region
    $region2: #{tpu_custom_call.1} parent=1 // pred_check
      _
    $region3: #{tpu_custom_call.1} parent=1 // pred_check_branch
      %17 = sbr.rel (0) target = $region5
    $region4: #{tpu_custom_call.1} parent=1 // pred_region
      %s19 = ssub.s32 256, 256
      %20 = vsyncadd [#allocation6], %s19
      %s21 = sshll.u32 [#allocation5], 4
      %s22 = int_to_ptr.vmem [resolvable:$true] %s21
      %27 = dma.hbm_to_vmem [thread:$0]  %s0, 256, %s22, [#allocation6], 128, 128, 8
    $region5: #{tpu_custom_call.1} parent=1 // pred_fallthru
      _
    // Predicated region
    $region6: #{tpu_custom_call.1} parent=1 // pred_check
      _
    $region7: #{tpu_custom_call.1} parent=1 // pred_check_branch
      %29 = sbr.rel (0) target = $region9
    $region8: #{tpu_custom_call.1} parent=1 // pred_region
      %s31 = ssub.s32 128, 128
      %32 = vsyncadd [#allocation9], %s31
      %s33 = sshll.u32 [#allocation8], 4
      %s34 = int_to_ptr.vmem [resolvable:$true] %s33
      %39 = dma.hbm_to_vmem [thread:$0]  %s1, 128, %s34, [#allocation9], 64, 64, 4
    $region9: #{tpu_custom_call.1} parent=1 // pred_fallthru
      _
    // Predicated region
    $region10: #{tpu_custom_call.1} parent=1 // pred_check
      _
    $region11: #{tpu_custom_call.1} parent=1 // pred_check_branch
      %41 = sbr.rel (0) target = $region13
    $region12: #{tpu_custom_call.1} parent=1 // pred_region
      %s43 = ssub.s32 128, 128
      %44 = vsyncadd [#allocation9], %s43
      %s45 = sshll.u32 [#allocation10], 4
      %s46 = int_to_ptr.vmem [resolvable:$true] %s45
      %51 = dma.hbm_to_vmem [thread:$0]  %s2, 128, %s46, [#allocation9], 64, 64, 4
    $region13: #{tpu_custom_call.1} parent=1 // pred_fallthru
      _
    // Predicated region
    $region14: #{tpu_custom_call.1} parent=1 // pred_check
      _
    $region15: #{tpu_custom_call.1} parent=1 // pred_check_branch
      %53 = sbr.rel (0) target = $region17
    $region16: #{tpu_custom_call.1} parent=1 // pred_region
      %s55 = ssub.s32 5120, 5120
      %56 = vsyncadd [#allocation12], %s55
      %s57 = sshll.u32 [#allocation11], 4
      %s58 = int_to_ptr.vmem [resolvable:$true] %s57
      %63 = dma.hbm_to_vmem [thread:$0]  %s3, 5120, %s58, [#allocation12], 320, 320, 20
    $region17: #{tpu_custom_call.1} parent=1 // pred_fallthru
      _
    // Predicated region
    $region18: #{tpu_custom_call.1} parent=1 // pred_check
      _
    $region19: #{tpu_custom_call.1} parent=1 // pred_check_branch
      %65 = sbr.rel (0) target = $region21
    $region20: #{tpu_custom_call.1} parent=1 // pred_region
      %s67 = ssub.s32 1024, 1024
      %68 = vsyncadd [#allocation12], %s67
      %s69 = sshll.u32 [#allocation13], 4
      %s70 = int_to_ptr.vmem [resolvable:$true] %s69
      %75 = dma.hbm_to_vmem [thread:$0]  %s4, 1024, %s70, [#allocation12], 64, 64, 4
    $region21: #{tpu_custom_call.1} parent=1 // pred_fallthru
      _
    // Predicated region
    $region22: #{tpu_custom_call.1} parent=1 // pred_check
      _
    $region23: #{tpu_custom_call.1} parent=1 // pred_check_branch
      %77 = sbr.rel (0) target = $region25
    $region24: #{tpu_custom_call.1} parent=1 // pred_region
      %78 = dma.done [#allocation6], 256
    $region25: #{tpu_custom_call.1} parent=1 // pred_fallthru
      _
    // Predicated region
    $region26: #{tpu_custom_call.1} parent=1 // pred_check
      _
    $region27: #{tpu_custom_call.1} parent=1 // pred_check_branch
      %80 = sbr.rel (0) target = $region29
    $region28: #{tpu_custom_call.1} parent=1 // pred_region
      %81 = dma.done [#allocation9], 128
    $region29: #{tpu_custom_call.1} parent=1 // pred_fallthru
      _
    // Predicated region
    $region30: #{tpu_custom_call.1} parent=1 // pred_check
      _
    $region31: #{tpu_custom_call.1} parent=1 // pred_check_branch
      %83 = sbr.rel (0) target = $region33
    $region32: #{tpu_custom_call.1} parent=1 // pred_region
      %84 = dma.done [#allocation9], 128
    $region33: #{tpu_custom_call.1} parent=1 // pred_fallthru
      _
    // Predicated region
    $region34: #{tpu_custom_call.1} parent=1 // pred_check
      _
    $region35: #{tpu_custom_call.1} parent=1 // pred_check_branch
      %86 = sbr.rel (0) target = $region37
    $region36: #{tpu_custom_call.1} parent=1 // pred_region
      %87 = dma.done [#allocation12], 5120
    $region37: #{tpu_custom_call.1} parent=1 // pred_fallthru
      _
    // Predicated region
    $region38: #{tpu_custom_call.1} parent=1 // pred_check
      _
    $region39: #{tpu_custom_call.1} parent=1 // pred_check_branch
      %89 = sbr.rel (0) target = $region41
    $region40: #{tpu_custom_call.1} parent=1 // pred_region
      %90 = dma.done [#allocation12], 1024
    $region41: #{tpu_custom_call.1} parent=1 // pred_fallthru
      _
    // Predicated region
    $region42: #{tpu_custom_call.1} parent=1 // pred_check
      _
    $region43: #{tpu_custom_call.1} parent=1 // pred_check_branch
      %93 = sbr.rel target = $region45
    $region44: #{tpu_custom_call.1} parent=1 // pred_region
      %94 = sst [smem:[#allocation17]] [#allocation16]
      %95 = sst [smem:[#allocation18]] [#allocation15]
    $region45: #{tpu_custom_call.1} parent=1 // pred_fallthru
      _
    %97 = shalt.err (0)
    %s99 = sshll.u32 [#allocation2], 4
    %s100 = int_to_ptr.vmem [resolvable:$true] %s99
    %102 = dma.hbm_to_vmem [thread:$0]  %s5, 6144, %s100, [#allocation4]
    %s103 = scalar_lea.sflag [#allocation4], 1
    // Predicated region
    $region46: #{tpu_custom_call.1} parent=1 // pred_check
      _
    $region47: #{tpu_custom_call.1} parent=1 // pred_check_branch
      %105 = sbr.rel target = $region49
    $region48: #{tpu_custom_call.1} parent=1 // pred_region
      %106 = sst [smem:[#allocation17]] [#allocation20]
      %107 = sst [smem:[#allocation18]] [#allocation19]
    $region49: #{tpu_custom_call.1} parent=1 // pred_fallthru
      _
    %109 = shalt.err (0)
    %s111 = sshll.u32 [#allocation3], 4
    %s112 = int_to_ptr.vmem [resolvable:$true] %s111
    %114 = dma.hbm_to_vmem [thread:$0]  %s6, 3072, %s112, %s103
    %v115 = vld [vmem:[#allocation5] sm:$0xff]
    %v116 = vld [vmem:[#allocation5 + $0x8] sm:$0xff]
    %v117 = vld [vmem:[#allocation8] sm:$0xf]
    %v118 = vld [vmem:[#allocation8 + $0x4] sm:$0xf]
    %v119 = vunpack.c.l.bf16 %v117
    %v120 = vunpack.c.l.bf16 %v118
    %v121 = vld [vmem:[#allocation10] sm:$0xf]
    %v122 = vld [vmem:[#allocation10 + $0x4] sm:$0xf]
    %v123 = vunpack.c.l.bf16 %v121
    %v124 = vunpack.c.l.bf16 %v122
    %v125 = vmul.f32 %v115, %v115
    %v126 = vmul.f32 %v116, %v116
    %127 = vadd.xlane.f32.xlu0 %v125
    %v128 = vpop.xlane.xlu0 %127
    %129 = vadd.xlane.f32.xlu0 %v126
    %v130 = vpop.xlane.xlu0 %129
    %v131 = vrcp.pop 128.0
    %v132 = vmul.f32 %v128, %v131
    %v133 = vmul.f32 %v130, %v131
    %v134 = vadd.f32 %v132, 1e-06
    %v135 = vadd.f32 %v133, 1e-06
    %v136 = vrsqrt.pop %v134
    %v137 = vrsqrt.pop %v135
    %v138 = vmul.f32 %v115, %v136
    %v139 = vmul.f32 %v116, %v137
    %v140 = vld [vmem:[#allocation11] sm:$0xff]
    %v141 = vld [vmem:[#allocation11 + $0x8] sm:$0xff]
    %v142 = vld [vmem:[#allocation11 + $0x10] sm:$0xf]
    %v143 = vld [vmem:[#allocation11 + $0x14] sm:$0xff]
    %v144 = vld [vmem:[#allocation11 + $0x1c] sm:$0xff]
    %v145 = vld [vmem:[#allocation11 + $0x24] sm:$0xf]
    %v146 = vld [vmem:[#allocation11 + $0x28] sm:$0xff]
    %v147 = vld [vmem:[#allocation11 + $0x30] sm:$0xff]
    %v148 = vld [vmem:[#allocation11 + $0x38] sm:$0xf]
    %v149 = vld [vmem:[#allocation11 + $0x3c] sm:$0xff]
    %v150 = vld [vmem:[#allocation11 + $0x44] sm:$0xff]
    %v151 = vld [vmem:[#allocation11 + $0x4c] sm:$0xf]
    %v152 = vld [vmem:[#allocation11 + $0x50] sm:$0xff]
    %v153 = vld [vmem:[#allocation11 + $0x58] sm:$0xff]
    %v154 = vld [vmem:[#allocation11 + $0x60] sm:$0xf]
    %v155 = vld [vmem:[#allocation11 + $0x64] sm:$0xff]
    %v156 = vld [vmem:[#allocation11 + $0x6c] sm:$0xff]
    %v157 = vld [vmem:[#allocation11 + $0x74] sm:$0xf]
    %v158 = vld [vmem:[#allocation11 + $0x78] sm:$0xff]
    %v159 = vld [vmem:[#allocation11 + $0x80] sm:$0xff]
    %v160 = vld [vmem:[#allocation11 + $0x88] sm:$0xf]
    %v161 = vld [vmem:[#allocation11 + $0x8c] sm:$0xff]
    %v162 = vld [vmem:[#allocation11 + $0x94] sm:$0xff]
    %v163 = vld [vmem:[#allocation11 + $0x9c] sm:$0xf]
    %v164 = vld [vmem:[#allocation11 + $0xa0] sm:$0xff]
    %v165 = vld [vmem:[#allocation11 + $0xa8] sm:$0xff]
    %v166 = vld [vmem:[#allocation11 + $0xb0] sm:$0xf]
    %v167 = vld [vmem:[#allocation11 + $0xb4] sm:$0xff]
    %v168 = vld [vmem:[#allocation11 + $0xbc] sm:$0xff]
    %v169 = vld [vmem:[#allocation11 + $0xc4] sm:$0xf]
    %v170 = vld [vmem:[#allocation11 + $0xc8] sm:$0xff]
    %v171 = vld [vmem:[#allocation11 + $0xd0] sm:$0xff]
    %v172 = vld [vmem:[#allocation11 + $0xd8] sm:$0xf]
    %v173 = vld [vmem:[#allocation11 + $0xdc] sm:$0xff]
    %v174 = vld [vmem:[#allocation11 + $0xe4] sm:$0xff]
    %v175 = vld [vmem:[#allocation11 + $0xec] sm:$0xf]
    %v176 = vld [vmem:[#allocation11 + $0xf0] sm:$0xff]
    %v177 = vld [vmem:[#allocation11 + $0xf8] sm:$0xff]
    %v178 = vld [vmem:[#allocation11 + $0x100] sm:$0xf]
    %v179 = vld [vmem:[#allocation11 + $0x104] sm:$0xff]
    %v180 = vld [vmem:[#allocation11 + $0x10c] sm:$0xff]
    %v181 = vld [vmem:[#allocation11 + $0x114] sm:$0xf]
    %v182 = vld [vmem:[#allocation11 + $0x118] sm:$0xff]
    %v183 = vld [vmem:[#allocation11 + $0x120] sm:$0xff]
    %v184 = vld [vmem:[#allocation11 + $0x128] sm:$0xf]
    %v185 = vld [vmem:[#allocation11 + $0x12c] sm:$0xff]
    %v186 = vld [vmem:[#allocation11 + $0x134] sm:$0xff]
    %v187 = vld [vmem:[#allocation11 + $0x13c] sm:$0xf]
    %v188 = vpack.c.bf16 %v139, %v138
    %v237 = vunpack.c.l.b16 %v140
    %v238 = vunpack.c.h.b16 %v140
    %v239 = vunpack.c.l.b16 %v141
    %v240 = vunpack.c.h.b16 %v141
    %v241 = vunpack.c.l.b16 %v142
    %v242 = vunpack.c.l.b16 %v143
    %v243 = vunpack.c.h.b16 %v143
    %v244 = vunpack.c.l.b16 %v144
    %v245 = vunpack.c.h.b16 %v144
    %v246 = vunpack.c.l.b16 %v145
    %v247 = vunpack.c.l.b16 %v146
    %v248 = vunpack.c.h.b16 %v146
    %v249 = vunpack.c.l.b16 %v147
    %v250 = vunpack.c.h.b16 %v147
    %v251 = vunpack.c.l.b16 %v148
    %v252 = vunpack.c.l.b16 %v149
    %v253 = vunpack.c.h.b16 %v149
    %v254 = vunpack.c.l.b16 %v150
    %v255 = vunpack.c.h.b16 %v150
    %v256 = vunpack.c.l.b16 %v151
    %v257 = vunpack.c.l.b16 %v152
    %v258 = vunpack.c.h.b16 %v152
    %v259 = vunpack.c.l.b16 %v153
    %v260 = vunpack.c.h.b16 %v153
    %v261 = vunpack.c.l.b16 %v154
    %v262 = vunpack.c.l.b16 %v155
    %v263 = vunpack.c.h.b16 %v155
    %v264 = vunpack.c.l.b16 %v156
    %v265 = vunpack.c.h.b16 %v156
    %v266 = vunpack.c.l.b16 %v157
    %v267 = vunpack.c.l.b16 %v158
    %v268 = vunpack.c.h.b16 %v158
    %v269 = vunpack.c.l.b16 %v159
    %v270 = vunpack.c.h.b16 %v159
    %v271 = vunpack.c.l.b16 %v160
    %v272 = vunpack.c.l.b16 %v161
    %v273 = vunpack.c.h.b16 %v161
    %v274 = vunpack.c.l.b16 %v162
    %v275 = vunpack.c.h.b16 %v162
    %v276 = vunpack.c.l.b16 %v163
    %v277 = vunpack.c.l.b16 %v164
    %v278 = vunpack.c.h.b16 %v164
    %v279 = vunpack.c.l.b16 %v165
    %v280 = vunpack.c.h.b16 %v165
    %v281 = vunpack.c.l.b16 %v166
    %v282 = vunpack.c.l.b16 %v167
    %v283 = vunpack.c.h.b16 %v167
    %v284 = vunpack.c.l.b16 %v168
    %v285 = vunpack.c.h.b16 %v168
    %v286 = vunpack.c.l.b16 %v169
    %v287 = vunpack.c.l.b16 %v170
    %v288 = vunpack.c.h.b16 %v170
    %v289 = vunpack.c.l.b16 %v171
    %v290 = vunpack.c.h.b16 %v171
    %v291 = vunpack.c.l.b16 %v172
    %v292 = vunpack.c.l.b16 %v173
    %v293 = vunpack.c.h.b16 %v173
    %v294 = vunpack.c.l.b16 %v174
    %v295 = vunpack.c.h.b16 %v174
    %v296 = vunpack.c.l.b16 %v175
    %v297 = vunpack.c.l.b16 %v176
    %v298 = vunpack.c.h.b16 %v176
    %v299 = vunpack.c.l.b16 %v177
    %v300 = vunpack.c.h.b16 %v177
    %v301 = vunpack.c.l.b16 %v178
    %v302 = vunpack.c.l.b16 %v179
    %v303 = vunpack.c.h.b16 %v179
    %v304 = vunpack.c.l.b16 %v180
    %v305 = vunpack.c.h.b16 %v180
    %v306 = vunpack.c.l.b16 %v181
    %v307 = vunpack.c.l.b16 %v182
    %v308 = vunpack.c.h.b16 %v182
    %v309 = vunpack.c.l.b16 %v183
    %v310 = vunpack.c.h.b16 %v183
    %v311 = vunpack.c.l.b16 %v184
    %v312 = vunpack.c.l.b16 %v185
    %v313 = vunpack.c.h.b16 %v185
    %v314 = vunpack.c.l.b16 %v186
    %v315 = vunpack.c.h.b16 %v186
    %v316 = vunpack.c.l.b16 %v187
    %v317 = vpack.c.b16 %v242, %v237
    %v318 = vpack.c.b16 %v243, %v238
    %v319 = vpack.c.b16 %v244, %v239
    %v320 = vpack.c.b16 %v245, %v240
    %v321 = vpack.c.b16 %v246, %v241
    %v322 = vpack.c.b16 %v252, %v247
    %v323 = vpack.c.b16 %v253, %v248
    %v324 = vpack.c.b16 %v254, %v249
    %v325 = vpack.c.b16 %v255, %v250
    %v326 = vpack.c.b16 %v256, %v251
    %v327 = vpack.c.b16 %v262, %v257
    %v328 = vpack.c.b16 %v263, %v258
    %v329 = vpack.c.b16 %v264, %v259
    %v330 = vpack.c.b16 %v265, %v260
    %v331 = vpack.c.b16 %v266, %v261
    %v332 = vpack.c.b16 %v272, %v267
    %v333 = vpack.c.b16 %v273, %v268
    %v334 = vpack.c.b16 %v274, %v269
    %v335 = vpack.c.b16 %v275, %v270
    %v336 = vpack.c.b16 %v276, %v271
    %v337 = vpack.c.b16 %v282, %v277
    %v338 = vpack.c.b16 %v283, %v278
    %v339 = vpack.c.b16 %v284, %v279
    %v340 = vpack.c.b16 %v285, %v280
    %v341 = vpack.c.b16 %v286, %v281
    %v342 = vpack.c.b16 %v292, %v287
    %v343 = vpack.c.b16 %v293, %v288
    %v344 = vpack.c.b16 %v294, %v289
    %v345 = vpack.c.b16 %v295, %v290
    %v346 = vpack.c.b16 %v296, %v291
    %v347 = vpack.c.b16 %v302, %v297
    %v348 = vpack.c.b16 %v303, %v298
    %v349 = vpack.c.b16 %v304, %v299
    %v350 = vpack.c.b16 %v305, %v300
    %v351 = vpack.c.b16 %v306, %v301
    %v352 = vpack.c.b16 %v312, %v307
    %v353 = vpack.c.b16 %v313, %v308
    %v354 = vpack.c.b16 %v314, %v309
    %v355 = vpack.c.b16 %v315, %v310
    %v356 = vpack.c.b16 %v316, %v311
    %397 = vmatprep.subr.bf16.mxu0 %v353
    %398 = vmatpush1.bf16.msra.mxu0 %v352
    %399 = vmatprep.subr.bf16.mxu0 %v348
    %400 = vmatpush1.bf16.msra.mxu0 %v347
    %401 = vmatprep.subr.bf16.mxu0 %v343
    %402 = vmatpush1.bf16.msra.mxu0 %v342
    %403 = vmatprep.subr.bf16.mxu0 %v338
    %404 = vmatpush1.bf16.msra.mxu0 %v337
    %405 = vmatprep.subr.bf16.mxu0 %v333
    %406 = vmatpush1.bf16.msra.mxu0 %v332
    %407 = vmatprep.subr.bf16.mxu0 %v328
    %408 = vmatpush1.bf16.msra.mxu0 %v327
    %409 = vmatprep.subr.bf16.mxu0 %v323
    %410 = vmatpush1.bf16.msra.mxu0 %v322
    %411 = vmatprep.subr.bf16.mxu0 %v318
    %412 = vmatpush1.bf16.msra.mxu0 %v317
    %413 = vmatprep.subr.bf16.mxu0 0
    %414 = vmatpush2.bf16.msra.mxu0 0
    %415 = vmatprep.subr.bf16.mxu0 0
    %416 = vmatpush2.bf16.msra.mxu0 0
    %417 = vmatprep.subr.bf16.mxu0 0
    %418 = vmatpush2.bf16.msra.mxu0 0
    %419 = vmatprep.subr.bf16.mxu0 0
    %420 = vmatpush2.bf16.msra.mxu0 0
    %421 = vmatprep.subr.bf16.mxu0 0
    %422 = vmatpush2.bf16.msra.mxu0 0
    %423 = vmatprep.subr.bf16.mxu0 0
    %424 = vmatpush2.bf16.msra.mxu0 0
    %425 = vmatprep.subr.bf16.mxu0 0
    %426 = vmatpush2.bf16.msra.mxu0 0
    %427 = vmatprep.subr.bf16.mxu0 0
    %428 = vmatpush2.bf16.msra.mxu0 0
    %429 = vmatprep.mubr.bf16.mxu0 0
    %430 = vmatmul.mubr.bf16.gmra.mxu0 %v188
    %v431 = vpop.f32.mrf.mxu0
    %v432 = vadd.f32 0.0, %v431
    %v433 = vpop.f32.mrf.mxu0
    %v434 = vadd.f32 0.0, %v433
    %v435 = vpop.f32.mrf.mxu0
    %v436 = vadd.f32 0.0, %v435
    %v437 = vpop.f32.mrf.mxu0
    %v438 = vadd.f32 0.0, %v437
    %439 = vdwg.mxu0
    %440 = vmatprep.subr.bf16.mxu0 %v355
    %441 = vmatpush1.bf16.msra.mxu0 %v354
    %442 = vmatprep.subr.bf16.mxu0 %v350
    %443 = vmatpush1.bf16.msra.mxu0 %v349
    %444 = vmatprep.subr.bf16.mxu0 %v345
    %445 = vmatpush1.bf16.msra.mxu0 %v344
    %446 = vmatprep.subr.bf16.mxu0 %v340
    %447 = vmatpush1.bf16.msra.mxu0 %v339
    %448 = vmatprep.subr.bf16.mxu0 %v335
    %449 = vmatpush1.bf16.msra.mxu0 %v334
    %450 = vmatprep.subr.bf16.mxu0 %v330
    %451 = vmatpush1.bf16.msra.mxu0 %v329
    %452 = vmatprep.subr.bf16.mxu0 %v325
    %453 = vmatpush1.bf16.msra.mxu0 %v324
    %454 = vmatprep.subr.bf16.mxu0 %v320
    %455 = vmatpush1.bf16.msra.mxu0 %v319
    %456 = vmatprep.subr.bf16.mxu0 0
    %457 = vmatpush2.bf16.msra.mxu0 0
    %458 = vmatprep.subr.bf16.mxu0 0
    %459 = vmatpush2.bf16.msra.mxu0 0
    %460 = vmatprep.subr.bf16.mxu0 0
    %461 = vmatpush2.bf16.msra.mxu0 0
    %462 = vmatprep.subr.bf16.mxu0 0
    %463 = vmatpush2.bf16.msra.mxu0 0
    %464 = vmatprep.subr.bf16.mxu0 0
    %465 = vmatpush2.bf16.msra.mxu0 0
    %466 = vmatprep.subr.bf16.mxu0 0
    %467 = vmatpush2.bf16.msra.mxu0 0
    %468 = vmatprep.subr.bf16.mxu0 0
    %469 = vmatpush2.bf16.msra.mxu0 0
    %470 = vmatprep.subr.bf16.mxu0 0
    %471 = vmatpush2.bf16.msra.mxu0 0
    %472 = vmatprep.mubr.bf16.mxu0 0
    %473 = vmatmul.mubr.bf16.gmra.mxu0 %v188
    %v474 = vpop.f32.mrf.mxu0
    %v475 = vadd.f32 0.0, %v474
    %v476 = vpop.f32.mrf.mxu0
    %v477 = vadd.f32 0.0, %v476
    %v478 = vpop.f32.mrf.mxu0
    %v479 = vadd.f32 0.0, %v478
    %v480 = vpop.f32.mrf.mxu0
    %v481 = vadd.f32 0.0, %v480
    %482 = vdwg.mxu0
    %483 = vmatprep.subr.bf16.mxu0 0
    %484 = vmatpush1.bf16.msra.mxu0 %v356
    %485 = vmatprep.subr.bf16.mxu0 0
    %486 = vmatpush1.bf16.msra.mxu0 %v351
    %487 = vmatprep.subr.bf16.mxu0 0
    %488 = vmatpush1.bf16.msra.mxu0 %v346
    %489 = vmatprep.subr.bf16.mxu0 0
    %490 = vmatpush1.bf16.msra.mxu0 %v341
    %491 = vmatprep.subr.bf16.mxu0 0
    %492 = vmatpush1.bf16.msra.mxu0 %v336
    %493 = vmatprep.subr.bf16.mxu0 0
    %494 = vmatpush1.bf16.msra.mxu0 %v331
    %495 = vmatprep.subr.bf16.mxu0 0
    %496 = vmatpush1.bf16.msra.mxu0 %v326
    %497 = vmatprep.subr.bf16.mxu0 0
    %498 = vmatpush1.bf16.msra.mxu0 %v321
    %499 = vmatprep.subr.bf16.mxu0 0
    %500 = vmatpush2.bf16.msra.mxu0 0
    %501 = vmatprep.subr.bf16.mxu0 0
    %502 = vmatpush2.bf16.msra.mxu0 0
    %503 = vmatprep.subr.bf16.mxu0 0
    %504 = vmatpush2.bf16.msra.mxu0 0
    %505 = vmatprep.subr.bf16.mxu0 0
    %506 = vmatpush2.bf16.msra.mxu0 0
    %507 = vmatprep.subr.bf16.mxu0 0
    %508 = vmatpush2.bf16.msra.mxu0 0
    %509 = vmatprep.subr.bf16.mxu0 0
    %510 = vmatpush2.bf16.msra.mxu0 0
    %511 = vmatprep.subr.bf16.mxu0 0
    %512 = vmatpush2.bf16.msra.mxu0 0
    %513 = vmatprep.subr.bf16.mxu0 0
    %514 = vmatpush2.bf16.msra.mxu0 0
    %515 = vmatprep.mubr.bf16.mxu0 0
    %516 = vmatmul.mubr.bf16.gmra.mxu0 %v188
    %v517 = vpop.f32.mrf.mxu0
    %v518 = vadd.f32 0.0, %v517
    %v519 = vpop.f32.mrf.mxu0
    %v520 = vpop.f32.mrf.mxu0
    %v521 = vadd.f32 0.0, %v520
    %v522 = vpop.f32.mrf.mxu0
    %523 = vdwg.mxu0
    %v524 = vmul.f32 %v432, %v119
    %v525 = vmul.f32 %v436, %v120
    %v526 = vmul.f32 %v477, %v123
    %v527 = vmul.f32 %v481, %v124
    %v528 = vadd.f32 %v524, %v526
    %v529 = vadd.f32 %v525, %v527
    %v530 = vmul.f32 %v434, %v119
    %v531 = vmul.f32 %v438, %v120
    %v532 = vmul.f32 %v518, %v123
    %v533 = vmul.f32 %v521, %v124
    %v534 = vadd.f32 %v530, %v532
    %v535 = vadd.f32 %v531, %v533
    %v536 = vlaneseq
    %v537 = vshrl.u32 %v536, 7
    %v538 = vadd.s32 %v537, 8
    %v539 = vadd.s32 %v537, 16
    %v540 = vadd.s32 %v537, 24
    %v541 = vadd.s32 %v537, 32
    %v542 = vadd.s32 %v537, 40
    %v543 = vadd.s32 %v537, 48
    %v544 = vadd.s32 %v537, 56
    %v545 = vlaneseq
    %v546 = vand.u32 %v545, 127
    %v547 = vshra.s32 %v537, 4
    %v548 = vshra.s32 %v538, 4
    %v549 = vshra.s32 %v539, 4
    %v550 = vshra.s32 %v540, 4
    %v551 = vshra.s32 %v541, 4
    %v552 = vshra.s32 %v542, 4
    %v553 = vshra.s32 %v543, 4
    %v554 = vshra.s32 %v544, 4
    %v555 = vshra.s32 %v546, 5
    %vm556 = vcmp.eq.s32.totalorder %v547, %v555
    %vm557 = vcmp.eq.s32.totalorder %v548, %v555
    %vm558 = vcmp.eq.s32.totalorder %v549, %v555
    %vm559 = vcmp.eq.s32.totalorder %v550, %v555
    %vm560 = vcmp.eq.s32.totalorder %v551, %v555
    %vm561 = vcmp.eq.s32.totalorder %v552, %v555
    %vm562 = vcmp.eq.s32.totalorder %v553, %v555
    %vm563 = vcmp.eq.s32.totalorder %v554, %v555
    %v564 = vsel %vm556, %v534, 0.0
    %v565 = vsel %vm557, %v535, 0.0
    %v566 = vsel %vm558, %v534, 0.0
    %v567 = vsel %vm559, %v535, 0.0
    %v568 = vsel %vm560, %v534, 0.0
    %v569 = vsel %vm561, %v535, 0.0
    %v570 = vsel %vm562, %v534, 0.0
    %v571 = vsel %vm563, %v535, 0.0
    %v572 = vsel %vm556, %v475, 0.0
    %v573 = vsel %vm557, %v479, 0.0
    %v574 = vsel %vm558, %v475, 0.0
    %v575 = vsel %vm559, %v479, 0.0
    %v576 = vsel %vm560, %v475, 0.0
    %v577 = vsel %vm561, %v479, 0.0
    %v578 = vsel %vm562, %v475, 0.0
    %v579 = vsel %vm563, %v479, 0.0
    %v580 = vand.u32 %v546, 15
    %v581 = vshra.s32 %v537, 3
    %v582 = vshra.s32 %v538, 3
    %v583 = vshra.s32 %v580, 3
    %vm584 = vcmp.eq.s32.totalorder %v581, %v583
    %vm585 = vcmp.eq.s32.totalorder %v582, %v583
    %vm586 = vcmp.ge.s32.totalorder %v537, %v580
    %vm587 = vcmp.ge.s32.totalorder %v538, %v580
    %vm588 = vmand %vm584, %vm586
    %vm589 = vmand %vm585, %vm587
    %v590 = vsel %vm588, 0.0, -1e+09
    %v591 = vsel %vm589, 0.0, -1e+09
    %v592 = vpack.c.bf16 %v529, %v528
    %v593 = vpack.c.bf16 %v565, %v564
    %v594 = vpack.c.bf16 %v567, %v566
    %v595 = vpack.c.bf16 %v569, %v568
    %v596 = vpack.c.bf16 %v571, %v570
    %597 = vmatprep.subr.bf16.mxu0 0
    %598 = vmatpush1.bf16.xpose.msra.mxu0 0
    %599 = vmatprep.subr.bf16.mxu0 0
    %600 = vmatpush1.bf16.xpose.msra.mxu0 0
    %601 = vmatprep.subr.bf16.mxu0 0
    %602 = vmatpush1.bf16.xpose.msra.mxu0 0
    %603 = vmatprep.subr.bf16.mxu0 0
    %604 = vmatpush1.bf16.xpose.msra.mxu0 0
    %605 = vmatprep.subr.bf16.mxu0 0
    %606 = vmatpush1.bf16.xpose.msra.mxu0 %v596
    %607 = vmatprep.subr.bf16.mxu0 0
    %608 = vmatpush1.bf16.xpose.msra.mxu0 %v595
    %609 = vmatprep.subr.bf16.mxu0 0
    %610 = vmatpush1.bf16.xpose.msra.mxu0 %v594
    %611 = vmatprep.subr.bf16.mxu0 0
    %612 = vmatpush1.bf16.xpose.msra.mxu0 %v593
    %613 = vmatprep.subr.bf16.mxu0 0
    %614 = vmatpush2.bf16.xpose.msra.mxu0 0
    %615 = vmatprep.subr.bf16.mxu0 0
    %616 = vmatpush2.bf16.xpose.msra.mxu0 0
    %617 = vmatprep.subr.bf16.mxu0 0
    %618 = vmatpush2.bf16.xpose.msra.mxu0 0
    %619 = vmatprep.subr.bf16.mxu0 0
    %620 = vmatpush2.bf16.xpose.msra.mxu0 0
    %621 = vmatprep.subr.bf16.mxu0 0
    %622 = vmatpush2.bf16.xpose.msra.mxu0 0
    %623 = vmatprep.subr.bf16.mxu0 0
    %624 = vmatpush2.bf16.xpose.msra.mxu0 0
    %625 = vmatprep.subr.bf16.mxu0 0
    %626 = vmatpush2.bf16.xpose.msra.mxu0 0
    %627 = vmatprep.subr.bf16.mxu0 0
    %628 = vmatpush2.bf16.xpose.msra.mxu0 0
    %629 = vmatprep.mubr.bf16.mxu0 0
    %630 = vmatmul.mubr.bf16.gmra.mxu0 %v592
    %v631 = vpop.f32.mrf.mxu0
    %v632 = vadd.f32 %v590, %v631
    %v633 = vpop.f32.mrf.mxu0
    %v634 = vpop.f32.mrf.mxu0
    %v635 = vadd.f32 %v591, %v634
    %v636 = vpop.f32.mrf.mxu0
    %637 = vdwg.mxu0
    %vm638 = vcmask 523264
    %v639 = vsel %vm638, %v632, -inf
    %640 = vmax.xlane.f32.xlu0 %v639
    %v641 = vpop.xlane.xlu0 %640
    %v642 = vsel %vm638, %v635, -inf
    %643 = vmax.xlane.f32.xlu0 %v642
    %v644 = vpop.xlane.xlu0 %643
    %v645 = vsub.f32 %v632, %v641
    %v646 = vsub.f32 %v635, %v644
    %v647 = vmul.f32 %v645, 1.442695
    %v648 = vpow.pop %v647
    %v649 = vmul.f32 %v646, 1.442695
    %v650 = vpow.pop %v649
    %v651 = vpack.c.bf16 %v650, %v648
    %v652 = vpack.c.bf16 %v573, %v572
    %v653 = vpack.c.bf16 %v575, %v574
    %v654 = vpack.c.bf16 %v577, %v576
    %v655 = vpack.c.bf16 %v579, %v578
    %v657 = vsel %vm638, %v651, 0
    %659 = vmatprep.subr.bf16.mxu0 0
    %660 = vmatpush1.bf16.msra.mxu0 0
    %661 = vmatprep.subr.bf16.mxu0 0
    %662 = vmatpush1.bf16.msra.mxu0 0
    %663 = vmatprep.subr.bf16.mxu0 0
    %664 = vmatpush1.bf16.msra.mxu0 0
    %665 = vmatprep.subr.bf16.mxu0 0
    %666 = vmatpush1.bf16.msra.mxu0 0
    %667 = vmatprep.subr.bf16.mxu0 0
    %668 = vmatpush1.bf16.msra.mxu0 %v655
    %669 = vmatprep.subr.bf16.mxu0 0
    %670 = vmatpush1.bf16.msra.mxu0 %v654
    %671 = vmatprep.subr.bf16.mxu0 0
    %672 = vmatpush1.bf16.msra.mxu0 %v653
    %673 = vmatprep.subr.bf16.mxu0 0
    %674 = vmatpush1.bf16.msra.mxu0 %v652
    %675 = vmatprep.subr.bf16.mxu0 0
    %676 = vmatpush2.bf16.msra.mxu0 0
    %677 = vmatprep.subr.bf16.mxu0 0
    %678 = vmatpush2.bf16.msra.mxu0 0
    %679 = vmatprep.subr.bf16.mxu0 0
    %680 = vmatpush2.bf16.msra.mxu0 0
    %681 = vmatprep.subr.bf16.mxu0 0
    %682 = vmatpush2.bf16.msra.mxu0 0
    %683 = vmatprep.subr.bf16.mxu0 0
    %684 = vmatpush2.bf16.msra.mxu0 0
    %685 = vmatprep.subr.bf16.mxu0 0
    %686 = vmatpush2.bf16.msra.mxu0 0
    %687 = vmatprep.subr.bf16.mxu0 0
    %688 = vmatpush2.bf16.msra.mxu0 0
    %689 = vmatprep.subr.bf16.mxu0 0
    %690 = vmatpush2.bf16.msra.mxu0 0
    %691 = vmatprep.mubr.bf16.mxu0 0
    %692 = vmatmul.mubr.bf16.gmra.mxu0 %v657
    %v693 = vpop.f32.mrf.mxu0
    %v694 = vadd.f32 0.0, %v693
    %v695 = vpop.f32.mrf.mxu0
    %v696 = vpop.f32.mrf.mxu0
    %v697 = vadd.f32 0.0, %v696
    %v698 = vpop.f32.mrf.mxu0
    %699 = vdwg.mxu0
    %v700 = vsel %vm556, 1, 0
    %v701 = vsel %vm557, 1, 0
    %v702 = vsel %vm558, 1, 0
    %v703 = vsel %vm559, 1, 0
    %v704 = vsel %vm560, 1, 0
    %v705 = vsel %vm561, 1, 0
    %v706 = vsel %vm562, 1, 0
    %v707 = vsel %vm563, 1, 0
    %v708 = vcvt.s32.f32 %v700
    %v709 = vcvt.s32.f32 %v701
    %v710 = vcvt.s32.f32 %v702
    %v711 = vcvt.s32.f32 %v703
    %v712 = vcvt.s32.f32 %v704
    %v713 = vcvt.s32.f32 %v705
    %v714 = vcvt.s32.f32 %v706
    %v715 = vcvt.s32.f32 %v707
    %v716 = vpack.c.bf16 %v709, %v708
    %v717 = vpack.c.bf16 %v711, %v710
    %v718 = vpack.c.bf16 %v713, %v712
    %v719 = vpack.c.bf16 %v715, %v714
    %720 = vmatprep.subr.bf16.mxu0 0
    %721 = vmatpush1.bf16.msra.mxu0 0
    %722 = vmatprep.subr.bf16.mxu0 0
    %723 = vmatpush1.bf16.msra.mxu0 0
    %724 = vmatprep.subr.bf16.mxu0 0
    %725 = vmatpush1.bf16.msra.mxu0 0
    %726 = vmatprep.subr.bf16.mxu0 0
    %727 = vmatpush1.bf16.msra.mxu0 0
    %728 = vmatprep.subr.bf16.mxu0 0
    %729 = vmatpush1.bf16.msra.mxu0 %v719
    %730 = vmatprep.subr.bf16.mxu0 0
    %731 = vmatpush1.bf16.msra.mxu0 %v718
    %732 = vmatprep.subr.bf16.mxu0 0
    %733 = vmatpush1.bf16.msra.mxu0 %v717
    %734 = vmatprep.subr.bf16.mxu0 0
    %735 = vmatpush1.bf16.msra.mxu0 %v716
    %736 = vmatprep.subr.bf16.mxu0 0
    %737 = vmatpush2.bf16.msra.mxu0 0
    %738 = vmatprep.subr.bf16.mxu0 0
    %739 = vmatpush2.bf16.msra.mxu0 0
    %740 = vmatprep.subr.bf16.mxu0 0
    %741 = vmatpush2.bf16.msra.mxu0 0
    %742 = vmatprep.subr.bf16.mxu0 0
    %743 = vmatpush2.bf16.msra.mxu0 0
    %744 = vmatprep.subr.bf16.mxu0 0
    %745 = vmatpush2.bf16.msra.mxu0 0
    %746 = vmatprep.subr.bf16.mxu0 0
    %747 = vmatpush2.bf16.msra.mxu0 0
    %748 = vmatprep.subr.bf16.mxu0 0
    %749 = vmatpush2.bf16.msra.mxu0 0
    %750 = vmatprep.subr.bf16.mxu0 0
    %751 = vmatpush2.bf16.msra.mxu0 0
    %752 = vmatprep.mubr.bf16.mxu0 0
    %753 = vmatmul.mubr.bf16.gmra.mxu0 %v657
    %v754 = vpop.f32.mrf.mxu0
    %v755 = vadd.f32 0.0, %v754
    %v756 = vpop.f32.mrf.mxu0
    %v757 = vpop.f32.mrf.mxu0
    %v758 = vadd.f32 0.0, %v757
    %v759 = vpop.f32.mrf.mxu0
    %760 = vdwg.mxu0
    %v761 = vrcp.pop %v755
    %v762 = vrcp.pop %v758
    %v763 = vmul.f32 %v694, %v761
    %v764 = vmul.f32 %v697, %v762
    %v765 = vld [vmem:[#allocation13] sm:$0xf]
    %v766 = vld [vmem:[#allocation13 + $0x4] sm:$0xf]
    %v767 = vld [vmem:[#allocation13 + $0x8] sm:$0xf]
    %v768 = vld [vmem:[#allocation13 + $0xc] sm:$0xf]
    %v769 = vld [vmem:[#allocation13 + $0x10] sm:$0xf]
    %v770 = vld [vmem:[#allocation13 + $0x14] sm:$0xf]
    %v771 = vld [vmem:[#allocation13 + $0x18] sm:$0xf]
    %v772 = vld [vmem:[#allocation13 + $0x1c] sm:$0xf]
    %v773 = vld [vmem:[#allocation13 + $0x20] sm:$0xf]
    %v774 = vld [vmem:[#allocation13 + $0x24] sm:$0xf]
    %v775 = vld [vmem:[#allocation13 + $0x28] sm:$0xf]
    %v776 = vld [vmem:[#allocation13 + $0x2c] sm:$0xf]
    %v777 = vld [vmem:[#allocation13 + $0x30] sm:$0xf]
    %v778 = vld [vmem:[#allocation13 + $0x34] sm:$0xf]
    %v779 = vld [vmem:[#allocation13 + $0x38] sm:$0xf]
    %v780 = vld [vmem:[#allocation13 + $0x3c] sm:$0xf]
    %v781 = vpack.c.bf16 %v764, %v763
    %v798 = vunpack.c.l.b16 %v765
    %v799 = vunpack.c.l.b16 %v766
    %v800 = vunpack.c.l.b16 %v767
    %v801 = vunpack.c.l.b16 %v768
    %v802 = vunpack.c.l.b16 %v769
    %v803 = vunpack.c.l.b16 %v770
    %v804 = vunpack.c.l.b16 %v771
    %v805 = vunpack.c.l.b16 %v772
    %v806 = vunpack.c.l.b16 %v773
    %v807 = vunpack.c.l.b16 %v774
    %v808 = vunpack.c.l.b16 %v775
    %v809 = vunpack.c.l.b16 %v776
    %v810 = vunpack.c.l.b16 %v777
    %v811 = vunpack.c.l.b16 %v778
    %v812 = vunpack.c.l.b16 %v779
    %v813 = vunpack.c.l.b16 %v780
    %v814 = vpack.c.b16 %v799, %v798
    %v815 = vpack.c.b16 %v801, %v800
    %v816 = vpack.c.b16 %v803, %v802
    %v817 = vpack.c.b16 %v805, %v804
    %v818 = vpack.c.b16 %v807, %v806
    %v819 = vpack.c.b16 %v809, %v808
    %v820 = vpack.c.b16 %v811, %v810
    %v821 = vpack.c.b16 %v813, %v812
    %830 = vmatprep.subr.bf16.mxu0 0
    %831 = vmatpush1.bf16.msra.mxu0 %v821
    %832 = vmatprep.subr.bf16.mxu0 0
    %833 = vmatpush1.bf16.msra.mxu0 %v820
    %834 = vmatprep.subr.bf16.mxu0 0
    %835 = vmatpush1.bf16.msra.mxu0 %v819
    %836 = vmatprep.subr.bf16.mxu0 0
    %837 = vmatpush1.bf16.msra.mxu0 %v818
    %838 = vmatprep.subr.bf16.mxu0 0
    %839 = vmatpush1.bf16.msra.mxu0 %v817
    %840 = vmatprep.subr.bf16.mxu0 0
    %841 = vmatpush1.bf16.msra.mxu0 %v816
    %842 = vmatprep.subr.bf16.mxu0 0
    %843 = vmatpush1.bf16.msra.mxu0 %v815
    %844 = vmatprep.subr.bf16.mxu0 0
    %845 = vmatpush1.bf16.msra.mxu0 %v814
    %846 = vmatprep.subr.bf16.mxu0 0
    %847 = vmatpush2.bf16.msra.mxu0 0
    %848 = vmatprep.subr.bf16.mxu0 0
    %849 = vmatpush2.bf16.msra.mxu0 0
    %850 = vmatprep.subr.bf16.mxu0 0
    %851 = vmatpush2.bf16.msra.mxu0 0
    %852 = vmatprep.subr.bf16.mxu0 0
    %853 = vmatpush2.bf16.msra.mxu0 0
    %854 = vmatprep.subr.bf16.mxu0 0
    %855 = vmatpush2.bf16.msra.mxu0 0
    %856 = vmatprep.subr.bf16.mxu0 0
    %857 = vmatpush2.bf16.msra.mxu0 0
    %858 = vmatprep.subr.bf16.mxu0 0
    %859 = vmatpush2.bf16.msra.mxu0 0
    %860 = vmatprep.subr.bf16.mxu0 0
    %861 = vmatpush2.bf16.msra.mxu0 0
    %862 = vmatprep.mubr.bf16.mxu0 0
    %863 = vmatmul.mubr.bf16.gmra.mxu0 %v781
    %v864 = vpop.f32.mrf.mxu0
    %v865 = vadd.f32 0.0, %v864
    %v866 = vpop.f32.mrf.mxu0
    %v867 = vpop.f32.mrf.mxu0
    %v868 = vadd.f32 0.0, %v867
    %v869 = vpop.f32.mrf.mxu0
    %870 = vdwg.mxu0
    %v871 = vadd.f32 %v115, %v865
    %v872 = vadd.f32 %v116, %v868
    %v873 = vmul.f32 %v871, %v871
    %v874 = vmul.f32 %v872, %v872
    %875 = vadd.xlane.f32.xlu0 %v873
    %v876 = vpop.xlane.xlu0 %875
    %877 = vadd.xlane.f32.xlu0 %v874
    %v878 = vpop.xlane.xlu0 %877
    %v879 = vmul.f32 %v876, %v131
    %v880 = vmul.f32 %v878, %v131
    %v881 = vadd.f32 %v879, 1e-06
    %v882 = vadd.f32 %v880, 1e-06
    %v883 = vrsqrt.pop %v881
    %v884 = vrsqrt.pop %v882
    %v885 = vmul.f32 %v871, %v883
    %v886 = vmul.f32 %v872, %v884
    %s887 = smul.u32 4, 16
    %s888 = smul.u32 %s887, 6
    %s889 = sshll.u32 %s888, 4
    %890 = dma.done [#allocation4], %s889
    %v891 = vld [vmem:[#allocation2] sm:$0xff]
    %v892 = vld [vmem:[#allocation2 + $0x8] sm:$0xff]
    %v893 = vld [vmem:[#allocation2 + $0x10] sm:$0xff]
    %v894 = vld [vmem:[#allocation2 + $0x18] sm:$0xff]
    %v895 = vld [vmem:[#allocation2 + $0x20] sm:$0xff]
    %v896 = vld [vmem:[#allocation2 + $0x28] sm:$0xff]
    %v897 = vld [vmem:[#allocation2 + $0x30] sm:$0xff]
    %v898 = vld [vmem:[#allocation2 + $0x38] sm:$0xff]
    %v899 = vld [vmem:[#allocation2 + $0x40] sm:$0xff]
    %v900 = vld [vmem:[#allocation2 + $0x48] sm:$0xff]
    %v901 = vld [vmem:[#allocation2 + $0x50] sm:$0xff]
    %v902 = vld [vmem:[#allocation2 + $0x58] sm:$0xff]
    %v903 = vld [vmem:[#allocation2 + $0x60] sm:$0xff]
    %v904 = vld [vmem:[#allocation2 + $0x68] sm:$0xff]
    %v905 = vld [vmem:[#allocation2 + $0x70] sm:$0xff]
    %v906 = vld [vmem:[#allocation2 + $0x78] sm:$0xff]
    %v907 = vld [vmem:[#allocation2 + $0x80] sm:$0xff]
    %v908 = vld [vmem:[#allocation2 + $0x88] sm:$0xff]
    %v909 = vld [vmem:[#allocation2 + $0x90] sm:$0xff]
    %v910 = vld [vmem:[#allocation2 + $0x98] sm:$0xff]
    %v911 = vld [vmem:[#allocation2 + $0xa0] sm:$0xff]
    %v912 = vld [vmem:[#allocation2 + $0xa8] sm:$0xff]
    %v913 = vld [vmem:[#allocation2 + $0xb0] sm:$0xff]
    %v914 = vld [vmem:[#allocation2 + $0xb8] sm:$0xff]
    %v915 = vld [vmem:[#allocation2 + $0xc0] sm:$0xff]
    %v916 = vld [vmem:[#allocation2 + $0xc8] sm:$0xff]
    %v917 = vld [vmem:[#allocation2 + $0xd0] sm:$0xff]
    %v918 = vld [vmem:[#allocation2 + $0xd8] sm:$0xff]
    %v919 = vld [vmem:[#allocation2 + $0xe0] sm:$0xff]
    %v920 = vld [vmem:[#allocation2 + $0xe8] sm:$0xff]
    %v921 = vld [vmem:[#allocation2 + $0xf0] sm:$0xff]
    %v922 = vld [vmem:[#allocation2 + $0xf8] sm:$0xff]
    %v923 = vld [vmem:[#allocation2 + $0x100] sm:$0xff]
    %v924 = vld [vmem:[#allocation2 + $0x108] sm:$0xff]
    %v925 = vld [vmem:[#allocation2 + $0x110] sm:$0xff]
    %v926 = vld [vmem:[#allocation2 + $0x118] sm:$0xff]
    %v927 = vld [vmem:[#allocation2 + $0x120] sm:$0xff]
    %v928 = vld [vmem:[#allocation2 + $0x128] sm:$0xff]
    %v929 = vld [vmem:[#allocation2 + $0x130] sm:$0xff]
    %v930 = vld [vmem:[#allocation2 + $0x138] sm:$0xff]
    %v931 = vld [vmem:[#allocation2 + $0x140] sm:$0xff]
    %v932 = vld [vmem:[#allocation2 + $0x148] sm:$0xff]
    %v933 = vld [vmem:[#allocation2 + $0x150] sm:$0xff]
    %v934 = vld [vmem:[#allocation2 + $0x158] sm:$0xff]
    %v935 = vld [vmem:[#allocation2 + $0x160] sm:$0xff]
    %v936 = vld [vmem:[#allocation2 + $0x168] sm:$0xff]
    %v937 = vld [vmem:[#allocation2 + $0x170] sm:$0xff]
    %v938 = vld [vmem:[#allocation2 + $0x178] sm:$0xff]
    %v939 = vpack.c.bf16 %v886, %v885
    %v988 = vunpack.c.l.b16 %v891
    %v989 = vunpack.c.h.b16 %v891
    %v990 = vunpack.c.l.b16 %v892
    %v991 = vunpack.c.h.b16 %v892
    %v992 = vunpack.c.l.b16 %v893
    %v993 = vunpack.c.h.b16 %v893
    %v994 = vunpack.c.l.b16 %v894
    %v995 = vunpack.c.h.b16 %v894
    %v996 = vunpack.c.l.b16 %v895
    %v997 = vunpack.c.h.b16 %v895
    %v998 = vunpack.c.l.b16 %v896
    %v999 = vunpack.c.h.b16 %v896
    %v1000 = vunpack.c.l.b16 %v897
    %v1001 = vunpack.c.h.b16 %v897
    %v1002 = vunpack.c.l.b16 %v898
    %v1003 = vunpack.c.h.b16 %v898
    %v1004 = vunpack.c.l.b16 %v899
    %v1005 = vunpack.c.h.b16 %v899
    %v1006 = vunpack.c.l.b16 %v900
    %v1007 = vunpack.c.h.b16 %v900
    %v1008 = vunpack.c.l.b16 %v901
    %v1009 = vunpack.c.h.b16 %v901
    %v1010 = vunpack.c.l.b16 %v902
    %v1011 = vunpack.c.h.b16 %v902
    %v1012 = vunpack.c.l.b16 %v903
    %v1013 = vunpack.c.h.b16 %v903
    %v1014 = vunpack.c.l.b16 %v904
    %v1015 = vunpack.c.h.b16 %v904
    %v1016 = vunpack.c.l.b16 %v905
    %v1017 = vunpack.c.h.b16 %v905
    %v1018 = vunpack.c.l.b16 %v906
    %v1019 = vunpack.c.h.b16 %v906
    %v1020 = vunpack.c.l.b16 %v907
    %v1021 = vunpack.c.h.b16 %v907
    %v1022 = vunpack.c.l.b16 %v908
    %v1023 = vunpack.c.h.b16 %v908
    %v1024 = vunpack.c.l.b16 %v909
    %v1025 = vunpack.c.h.b16 %v909
    %v1026 = vunpack.c.l.b16 %v910
    %v1027 = vunpack.c.h.b16 %v910
    %v1028 = vunpack.c.l.b16 %v911
    %v1029 = vunpack.c.h.b16 %v911
    %v1030 = vunpack.c.l.b16 %v912
    %v1031 = vunpack.c.h.b16 %v912
    %v1032 = vunpack.c.l.b16 %v913
    %v1033 = vunpack.c.h.b16 %v913
    %v1034 = vunpack.c.l.b16 %v914
    %v1035 = vunpack.c.h.b16 %v914
    %v1036 = vunpack.c.l.b16 %v915
    %v1037 = vunpack.c.h.b16 %v915
    %v1038 = vunpack.c.l.b16 %v916
    %v1039 = vunpack.c.h.b16 %v916
    %v1040 = vunpack.c.l.b16 %v917
    %v1041 = vunpack.c.h.b16 %v917
    %v1042 = vunpack.c.l.b16 %v918
    %v1043 = vunpack.c.h.b16 %v918
    %v1044 = vunpack.c.l.b16 %v919
    %v1045 = vunpack.c.h.b16 %v919
    %v1046 = vunpack.c.l.b16 %v920
    %v1047 = vunpack.c.h.b16 %v920
    %v1048 = vunpack.c.l.b16 %v921
    %v1049 = vunpack.c.h.b16 %v921
    %v1050 = vunpack.c.l.b16 %v922
    %v1051 = vunpack.c.h.b16 %v922
    %v1052 = vunpack.c.l.b16 %v923
    %v1053 = vunpack.c.h.b16 %v923
    %v1054 = vunpack.c.l.b16 %v924
    %v1055 = vunpack.c.h.b16 %v924
    %v1056 = vunpack.c.l.b16 %v925
    %v1057 = vunpack.c.h.b16 %v925
    %v1058 = vunpack.c.l.b16 %v926
    %v1059 = vunpack.c.h.b16 %v926
    %v1060 = vunpack.c.l.b16 %v927
    %v1061 = vunpack.c.h.b16 %v927
    %v1062 = vunpack.c.l.b16 %v928
    %v1063 = vunpack.c.h.b16 %v928
    %v1064 = vunpack.c.l.b16 %v929
    %v1065 = vunpack.c.h.b16 %v929
    %v1066 = vunpack.c.l.b16 %v930
    %v1067 = vunpack.c.h.b16 %v930
    %v1068 = vunpack.c.l.b16 %v931
    %v1069 = vunpack.c.h.b16 %v931
    %v1070 = vunpack.c.l.b16 %v932
    %v1071 = vunpack.c.h.b16 %v932
    %v1072 = vunpack.c.l.b16 %v933
    %v1073 = vunpack.c.h.b16 %v933
    %v1074 = vunpack.c.l.b16 %v934
    %v1075 = vunpack.c.h.b16 %v934
    %v1076 = vunpack.c.l.b16 %v935
    %v1077 = vunpack.c.h.b16 %v935
    %v1078 = vunpack.c.l.b16 %v936
    %v1079 = vunpack.c.h.b16 %v936
    %v1080 = vunpack.c.l.b16 %v937
    %v1081 = vunpack.c.h.b16 %v937
    %v1082 = vunpack.c.l.b16 %v938
    %v1083 = vunpack.c.h.b16 %v938
    %v1084 = vpack.c.b16 %v994, %v988
    %v1085 = vpack.c.b16 %v995, %v989
    %v1086 = vpack.c.b16 %v996, %v990
    %v1087 = vpack.c.b16 %v997, %v991
    %v1088 = vpack.c.b16 %v998, %v992
    %v1089 = vpack.c.b16 %v999, %v993
    %v1090 = vpack.c.b16 %v1006, %v1000
    %v1091 = vpack.c.b16 %v1007, %v1001
    %v1092 = vpack.c.b16 %v1008, %v1002
    %v1093 = vpack.c.b16 %v1009, %v1003
    %v1094 = vpack.c.b16 %v1010, %v1004
    %v1095 = vpack.c.b16 %v1011, %v1005
    %v1096 = vpack.c.b16 %v1018, %v1012
    %v1097 = vpack.c.b16 %v1019, %v1013
    %v1098 = vpack.c.b16 %v1020, %v1014
    %v1099 = vpack.c.b16 %v1021, %v1015
    %v1100 = vpack.c.b16 %v1022, %v1016
    %v1101 = vpack.c.b16 %v1023, %v1017
    %v1102 = vpack.c.b16 %v1030, %v1024
    %v1103 = vpack.c.b16 %v1031, %v1025
    %v1104 = vpack.c.b16 %v1032, %v1026
    %v1105 = vpack.c.b16 %v1033, %v1027
    %v1106 = vpack.c.b16 %v1034, %v1028
    %v1107 = vpack.c.b16 %v1035, %v1029
    %v1108 = vpack.c.b16 %v1042, %v1036
    %v1109 = vpack.c.b16 %v1043, %v1037
    %v1110 = vpack.c.b16 %v1044, %v1038
    %v1111 = vpack.c.b16 %v1045, %v1039
    %v1112 = vpack.c.b16 %v1046, %v1040
    %v1113 = vpack.c.b16 %v1047, %v1041
    %v1114 = vpack.c.b16 %v1054, %v1048
    %v1115 = vpack.c.b16 %v1055, %v1049
    %v1116 = vpack.c.b16 %v1056, %v1050
    %v1117 = vpack.c.b16 %v1057, %v1051
    %v1118 = vpack.c.b16 %v1058, %v1052
    %v1119 = vpack.c.b16 %v1059, %v1053
    %v1120 = vpack.c.b16 %v1066, %v1060
    %v1121 = vpack.c.b16 %v1067, %v1061
    %v1122 = vpack.c.b16 %v1068, %v1062
    %v1123 = vpack.c.b16 %v1069, %v1063
    %v1124 = vpack.c.b16 %v1070, %v1064
    %v1125 = vpack.c.b16 %v1071, %v1065
    %v1126 = vpack.c.b16 %v1078, %v1072
    %v1127 = vpack.c.b16 %v1079, %v1073
    %v1128 = vpack.c.b16 %v1080, %v1074
    %v1129 = vpack.c.b16 %v1081, %v1075
    %v1130 = vpack.c.b16 %v1082, %v1076
    %v1131 = vpack.c.b16 %v1083, %v1077
    %1180 = vmatprep.subr.bf16.mxu0 %v1127
    %1181 = vmatpush1.bf16.msra.mxu0 %v1126
    %1182 = vmatprep.subr.bf16.mxu0 %v1121
    %1183 = vmatpush1.bf16.msra.mxu0 %v1120
    %1184 = vmatprep.subr.bf16.mxu0 %v1115
    %1185 = vmatpush1.bf16.msra.mxu0 %v1114
    %1186 = vmatprep.subr.bf16.mxu0 %v1109
    %1187 = vmatpush1.bf16.msra.mxu0 %v1108
    %1188 = vmatprep.subr.bf16.mxu0 %v1103
    %1189 = vmatpush1.bf16.msra.mxu0 %v1102
    %1190 = vmatprep.subr.bf16.mxu0 %v1097
    %1191 = vmatpush1.bf16.msra.mxu0 %v1096
    %1192 = vmatprep.subr.bf16.mxu0 %v1091
    %1193 = vmatpush1.bf16.msra.mxu0 %v1090
    %1194 = vmatprep.subr.bf16.mxu0 %v1085
    %1195 = vmatpush1.bf16.msra.mxu0 %v1084
    %1196 = vmatprep.subr.bf16.mxu0 0
    %1197 = vmatpush2.bf16.msra.mxu0 0
    %1198 = vmatprep.subr.bf16.mxu0 0
    %1199 = vmatpush2.bf16.msra.mxu0 0
    %1200 = vmatprep.subr.bf16.mxu0 0
    %1201 = vmatpush2.bf16.msra.mxu0 0
    %1202 = vmatprep.subr.bf16.mxu0 0
    %1203 = vmatpush2.bf16.msra.mxu0 0
    %1204 = vmatprep.subr.bf16.mxu0 0
    %1205 = vmatpush2.bf16.msra.mxu0 0
    %1206 = vmatprep.subr.bf16.mxu0 0
    %1207 = vmatpush2.bf16.msra.mxu0 0
    %1208 = vmatprep.subr.bf16.mxu0 0
    %1209 = vmatpush2.bf16.msra.mxu0 0
    %1210 = vmatprep.subr.bf16.mxu0 0
    %1211 = vmatpush2.bf16.msra.mxu0 0
    %1212 = vmatprep.mubr.bf16.mxu0 0
    %1213 = vmatmul.mubr.bf16.gmra.mxu0 %v939
    %v1214 = vpop.f32.mrf.mxu0
    %v1215 = vadd.f32 0.0, %v1214
    %v1216 = vpop.f32.mrf.mxu0
    %v1217 = vadd.f32 0.0, %v1216
    %v1218 = vpop.f32.mrf.mxu0
    %v1219 = vadd.f32 0.0, %v1218
    %v1220 = vpop.f32.mrf.mxu0
    %v1221 = vadd.f32 0.0, %v1220
    %1222 = vdwg.mxu0
    %1223 = vmatprep.subr.bf16.mxu0 %v1129
    %1224 = vmatpush1.bf16.msra.mxu0 %v1128
    %1225 = vmatprep.subr.bf16.mxu0 %v1123
    %1226 = vmatpush1.bf16.msra.mxu0 %v1122
    %1227 = vmatprep.subr.bf16.mxu0 %v1117
    %1228 = vmatpush1.bf16.msra.mxu0 %v1116
    %1229 = vmatprep.subr.bf16.mxu0 %v1111
    %1230 = vmatpush1.bf16.msra.mxu0 %v1110
    %1231 = vmatprep.subr.bf16.mxu0 %v1105
    %1232 = vmatpush1.bf16.msra.mxu0 %v1104
    %1233 = vmatprep.subr.bf16.mxu0 %v1099
    %1234 = vmatpush1.bf16.msra.mxu0 %v1098
    %1235 = vmatprep.subr.bf16.mxu0 %v1093
    %1236 = vmatpush1.bf16.msra.mxu0 %v1092
    %1237 = vmatprep.subr.bf16.mxu0 %v1087
    %1238 = vmatpush1.bf16.msra.mxu0 %v1086
    %1239 = vmatprep.subr.bf16.mxu0 0
    %1240 = vmatpush2.bf16.msra.mxu0 0
    %1241 = vmatprep.subr.bf16.mxu0 0
    %1242 = vmatpush2.bf16.msra.mxu0 0
    %1243 = vmatprep.subr.bf16.mxu0 0
    %1244 = vmatpush2.bf16.msra.mxu0 0
    %1245 = vmatprep.subr.bf16.mxu0 0
    %1246 = vmatpush2.bf16.msra.mxu0 0
    %1247 = vmatprep.subr.bf16.mxu0 0
    %1248 = vmatpush2.bf16.msra.mxu0 0
    %1249 = vmatprep.subr.bf16.mxu0 0
    %1250 = vmatpush2.bf16.msra.mxu0 0
    %1251 = vmatprep.subr.bf16.mxu0 0
    %1252 = vmatpush2.bf16.msra.mxu0 0
    %1253 = vmatprep.subr.bf16.mxu0 0
    %1254 = vmatpush2.bf16.msra.mxu0 0
    %1255 = vmatprep.mubr.bf16.mxu0 0
    %1256 = vmatmul.mubr.bf16.gmra.mxu0 %v939
    %v1257 = vpop.f32.mrf.mxu0
    %v1258 = vadd.f32 0.0, %v1257
    %v1259 = vpop.f32.mrf.mxu0
    %v1260 = vadd.f32 0.0, %v1259
    %v1261 = vpop.f32.mrf.mxu0
    %v1262 = vadd.f32 0.0, %v1261
    %v1263 = vpop.f32.mrf.mxu0
    %v1264 = vadd.f32 0.0, %v1263
    %1265 = vdwg.mxu0
    %1266 = vmatprep.subr.bf16.mxu0 %v1131
    %1267 = vmatpush1.bf16.msra.mxu0 %v1130
    %1268 = vmatprep.subr.bf16.mxu0 %v1125
    %1269 = vmatpush1.bf16.msra.mxu0 %v1124
    %1270 = vmatprep.subr.bf16.mxu0 %v1119
    %1271 = vmatpush1.bf16.msra.mxu0 %v1118
    %1272 = vmatprep.subr.bf16.mxu0 %v1113
    %1273 = vmatpush1.bf16.msra.mxu0 %v1112
    %1274 = vmatprep.subr.bf16.mxu0 %v1107
    %1275 = vmatpush1.bf16.msra.mxu0 %v1106
    %1276 = vmatprep.subr.bf16.mxu0 %v1101
    %1277 = vmatpush1.bf16.msra.mxu0 %v1100
    %1278 = vmatprep.subr.bf16.mxu0 %v1095
    %1279 = vmatpush1.bf16.msra.mxu0 %v1094
    %1280 = vmatprep.subr.bf16.mxu0 %v1089
    %1281 = vmatpush1.bf16.msra.mxu0 %v1088
    %1282 = vmatprep.subr.bf16.mxu0 0
    %1283 = vmatpush2.bf16.msra.mxu0 0
    %1284 = vmatprep.subr.bf16.mxu0 0
    %1285 = vmatpush2.bf16.msra.mxu0 0
    %1286 = vmatprep.subr.bf16.mxu0 0
    %1287 = vmatpush2.bf16.msra.mxu0 0
    %1288 = vmatprep.subr.bf16.mxu0 0
    %1289 = vmatpush2.bf16.msra.mxu0 0
    %1290 = vmatprep.subr.bf16.mxu0 0
    %1291 = vmatpush2.bf16.msra.mxu0 0
    %1292 = vmatprep.subr.bf16.mxu0 0
    %1293 = vmatpush2.bf16.msra.mxu0 0
    %1294 = vmatprep.subr.bf16.mxu0 0
    %1295 = vmatpush2.bf16.msra.mxu0 0
    %1296 = vmatprep.subr.bf16.mxu0 0
    %1297 = vmatpush2.bf16.msra.mxu0 0
    %1298 = vmatprep.mubr.bf16.mxu0 0
    %1299 = vmatmul.mubr.bf16.gmra.mxu0 %v939
    %v1300 = vpop.f32.mrf.mxu0
    %v1301 = vadd.f32 0.0, %v1300
    %v1302 = vpop.f32.mrf.mxu0
    %v1303 = vadd.f32 0.0, %v1302
    %v1304 = vpop.f32.mrf.mxu0
    %v1305 = vadd.f32 0.0, %v1304
    %v1306 = vpop.f32.mrf.mxu0
    %v1307 = vadd.f32 0.0, %v1306
    %1308 = vdwg.mxu0
    %s1309 = smul.u32 4, 48
    %s1310 = smul.u32 %s1309, 1
    %s1311 = sshll.u32 %s1310, 4
    %1312 = dma.done %s103, %s1311
    %v1313 = vxor.u32 %v1215, 2147483648
    %v1314 = vxor.u32 %v1217, 2147483648
    %v1315 = vxor.u32 %v1258, 2147483648
    %v1316 = vxor.u32 %v1219, 2147483648
    %v1317 = vxor.u32 %v1221, 2147483648
    %v1318 = vxor.u32 %v1262, 2147483648
    %v1319 = vmul.f32 %v1313, 1.442695
    %v1320 = vpow.pop %v1319
    %v1321 = vmul.f32 %v1314, 1.442695
    %v1322 = vpow.pop %v1321
    %v1323 = vmul.f32 %v1315, 1.442695
    %v1324 = vpow.pop %v1323
    %v1325 = vmul.f32 %v1316, 1.442695
    %v1326 = vpow.pop %v1325
    %v1327 = vmul.f32 %v1317, 1.442695
    %v1328 = vpow.pop %v1327
    %v1329 = vmul.f32 %v1318, 1.442695
    %v1330 = vpow.pop %v1329
    %v1331 = vadd.f32 %v1320, 1.0
    %v1332 = vadd.f32 %v1322, 1.0
    %v1333 = vadd.f32 %v1324, 1.0
    %v1334 = vadd.f32 %v1326, 1.0
    %v1335 = vadd.f32 %v1328, 1.0
    %v1336 = vadd.f32 %v1330, 1.0
    %v1337 = vrcp.pop %v1331
    %v1338 = vmul.f32 1.0, %v1337
    %v1339 = vrcp.pop %v1332
    %v1340 = vmul.f32 1.0, %v1339
    %v1341 = vrcp.pop %v1333
    %v1342 = vmul.f32 1.0, %v1341
    %v1343 = vrcp.pop %v1334
    %v1344 = vmul.f32 1.0, %v1343
    %v1345 = vrcp.pop %v1335
    %v1346 = vmul.f32 1.0, %v1345
    %v1347 = vrcp.pop %v1336
    %v1348 = vmul.f32 1.0, %v1347
    %v1349 = vmul.f32 %v1215, %v1338
    %v1350 = vmul.f32 %v1217, %v1340
    %v1351 = vmul.f32 %v1258, %v1342
    %v1352 = vmul.f32 %v1219, %v1344
    %v1353 = vmul.f32 %v1221, %v1346
    %v1354 = vmul.f32 %v1262, %v1348
    %v1355 = vmul.f32 %v1349, %v1260
    %v1356 = vmul.f32 %v1350, %v1301
    %v1357 = vmul.f32 %v1351, %v1303
    %v1358 = vmul.f32 %v1352, %v1264
    %v1359 = vmul.f32 %v1353, %v1305
    %v1360 = vmul.f32 %v1354, %v1307
    %v1361 = vld [vmem:[#allocation3] sm:$0xf]
    %v1362 = vld [vmem:[#allocation3 + $0x4] sm:$0xf]
    %v1363 = vld [vmem:[#allocation3 + $0x8] sm:$0xf]
    %v1364 = vld [vmem:[#allocation3 + $0xc] sm:$0xf]
    %v1365 = vld [vmem:[#allocation3 + $0x10] sm:$0xf]
    %v1366 = vld [vmem:[#allocation3 + $0x14] sm:$0xf]
    %v1367 = vld [vmem:[#allocation3 + $0x18] sm:$0xf]
    %v1368 = vld [vmem:[#allocation3 + $0x1c] sm:$0xf]
    %v1369 = vld [vmem:[#allocation3 + $0x20] sm:$0xf]
    %v1370 = vld [vmem:[#allocation3 + $0x24] sm:$0xf]
    %v1371 = vld [vmem:[#allocation3 + $0x28] sm:$0xf]
    %v1372 = vld [vmem:[#allocation3 + $0x2c] sm:$0xf]
    %v1373 = vld [vmem:[#allocation3 + $0x30] sm:$0xf]
    %v1374 = vld [vmem:[#allocation3 + $0x34] sm:$0xf]
    %v1375 = vld [vmem:[#allocation3 + $0x38] sm:$0xf]
    %v1376 = vld [vmem:[#allocation3 + $0x3c] sm:$0xf]
    %v1377 = vld [vmem:[#allocation3 + $0x40] sm:$0xf]
    %v1378 = vld [vmem:[#allocation3 + $0x44] sm:$0xf]
    %v1379 = vld [vmem:[#allocation3 + $0x48] sm:$0xf]
    %v1380 = vld [vmem:[#allocation3 + $0x4c] sm:$0xf]
    %v1381 = vld [vmem:[#allocation3 + $0x50] sm:$0xf]
    %v1382 = vld [vmem:[#allocation3 + $0x54] sm:$0xf]
    %v1383 = vld [vmem:[#allocation3 + $0x58] sm:$0xf]
    %v1384 = vld [vmem:[#allocation3 + $0x5c] sm:$0xf]
    %v1385 = vld [vmem:[#allocation3 + $0x60] sm:$0xf]
    %v1386 = vld [vmem:[#allocation3 + $0x64] sm:$0xf]
    %v1387 = vld [vmem:[#allocation3 + $0x68] sm:$0xf]
    %v1388 = vld [vmem:[#allocation3 + $0x6c] sm:$0xf]
    %v1389 = vld [vmem:[#allocation3 + $0x70] sm:$0xf]
    %v1390 = vld [vmem:[#allocation3 + $0x74] sm:$0xf]
    %v1391 = vld [vmem:[#allocation3 + $0x78] sm:$0xf]
    %v1392 = vld [vmem:[#allocation3 + $0x7c] sm:$0xf]
    %v1393 = vld [vmem:[#allocation3 + $0x80] sm:$0xf]
    %v1394 = vld [vmem:[#allocation3 + $0x84] sm:$0xf]
    %v1395 = vld [vmem:[#allocation3 + $0x88] sm:$0xf]
    %v1396 = vld [vmem:[#allocation3 + $0x8c] sm:$0xf]
    %v1397 = vld [vmem:[#allocation3 + $0x90] sm:$0xf]
    %v1398 = vld [vmem:[#allocation3 + $0x94] sm:$0xf]
    %v1399 = vld [vmem:[#allocation3 + $0x98] sm:$0xf]
    %v1400 = vld [vmem:[#allocation3 + $0x9c] sm:$0xf]
    %v1401 = vld [vmem:[#allocation3 + $0xa0] sm:$0xf]
    %v1402 = vld [vmem:[#allocation3 + $0xa4] sm:$0xf]
    %v1403 = vld [vmem:[#allocation3 + $0xa8] sm:$0xf]
    %v1404 = vld [vmem:[#allocation3 + $0xac] sm:$0xf]
    %v1405 = vld [vmem:[#allocation3 + $0xb0] sm:$0xf]
    %v1406 = vld [vmem:[#allocation3 + $0xb4] sm:$0xf]
    %v1407 = vld [vmem:[#allocation3 + $0xb8] sm:$0xf]
    %v1408 = vld [vmem:[#allocation3 + $0xbc] sm:$0xf]
    %v1409 = vpack.c.bf16 %v1358, %v1355
    %v1410 = vpack.c.bf16 %v1359, %v1356
    %v1411 = vpack.c.bf16 %v1360, %v1357
    %v1460 = vunpack.c.l.b16 %v1361
    %v1461 = vunpack.c.l.b16 %v1362
    %v1462 = vunpack.c.l.b16 %v1363
    %v1463 = vunpack.c.l.b16 %v1364
    %v1464 = vunpack.c.l.b16 %v1365
    %v1465 = vunpack.c.l.b16 %v1366
    %v1466 = vunpack.c.l.b16 %v1367
    %v1467 = vunpack.c.l.b16 %v1368
    %v1468 = vunpack.c.l.b16 %v1369
    %v1469 = vunpack.c.l.b16 %v1370
    %v1470 = vunpack.c.l.b16 %v1371
    %v1471 = vunpack.c.l.b16 %v1372
    %v1472 = vunpack.c.l.b16 %v1373
    %v1473 = vunpack.c.l.b16 %v1374
    %v1474 = vunpack.c.l.b16 %v1375
    %v1475 = vunpack.c.l.b16 %v1376
    %v1476 = vunpack.c.l.b16 %v1377
    %v1477 = vunpack.c.l.b16 %v1378
    %v1478 = vunpack.c.l.b16 %v1379
    %v1479 = vunpack.c.l.b16 %v1380
    %v1480 = vunpack.c.l.b16 %v1381
    %v1481 = vunpack.c.l.b16 %v1382
    %v1482 = vunpack.c.l.b16 %v1383
    %v1483 = vunpack.c.l.b16 %v1384
    %v1484 = vunpack.c.l.b16 %v1385
    %v1485 = vunpack.c.l.b16 %v1386
    %v1486 = vunpack.c.l.b16 %v1387
    %v1487 = vunpack.c.l.b16 %v1388
    %v1488 = vunpack.c.l.b16 %v1389
    %v1489 = vunpack.c.l.b16 %v1390
    %v1490 = vunpack.c.l.b16 %v1391
    %v1491 = vunpack.c.l.b16 %v1392
    %v1492 = vunpack.c.l.b16 %v1393
    %v1493 = vunpack.c.l.b16 %v1394
    %v1494 = vunpack.c.l.b16 %v1395
    %v1495 = vunpack.c.l.b16 %v1396
    %v1496 = vunpack.c.l.b16 %v1397
    %v1497 = vunpack.c.l.b16 %v1398
    %v1498 = vunpack.c.l.b16 %v1399
    %v1499 = vunpack.c.l.b16 %v1400
    %v1500 = vunpack.c.l.b16 %v1401
    %v1501 = vunpack.c.l.b16 %v1402
    %v1502 = vunpack.c.l.b16 %v1403
    %v1503 = vunpack.c.l.b16 %v1404
    %v1504 = vunpack.c.l.b16 %v1405
    %v1505 = vunpack.c.l.b16 %v1406
    %v1506 = vunpack.c.l.b16 %v1407
    %v1507 = vunpack.c.l.b16 %v1408
    %v1508 = vpack.c.b16 %v1461, %v1460
    %v1509 = vpack.c.b16 %v1463, %v1462
    %v1510 = vpack.c.b16 %v1465, %v1464
    %v1511 = vpack.c.b16 %v1467, %v1466
    %v1512 = vpack.c.b16 %v1469, %v1468
    %v1513 = vpack.c.b16 %v1471, %v1470
    %v1514 = vpack.c.b16 %v1473, %v1472
    %v1515 = vpack.c.b16 %v1475, %v1474
    %v1516 = vpack.c.b16 %v1477, %v1476
    %v1517 = vpack.c.b16 %v1479, %v1478
    %v1518 = vpack.c.b16 %v1481, %v1480
    %v1519 = vpack.c.b16 %v1483, %v1482
    %v1520 = vpack.c.b16 %v1485, %v1484
    %v1521 = vpack.c.b16 %v1487, %v1486
    %v1522 = vpack.c.b16 %v1489, %v1488
    %v1523 = vpack.c.b16 %v1491, %v1490
    %v1524 = vpack.c.b16 %v1493, %v1492
    %v1525 = vpack.c.b16 %v1495, %v1494
    %v1526 = vpack.c.b16 %v1497, %v1496
    %v1527 = vpack.c.b16 %v1499, %v1498
    %v1528 = vpack.c.b16 %v1501, %v1500
    %v1529 = vpack.c.b16 %v1503, %v1502
    %v1530 = vpack.c.b16 %v1505, %v1504
    %v1531 = vpack.c.b16 %v1507, %v1506
    %1556 = vmatprep.subr.bf16.mxu0 0
    %1557 = vmatpush1.bf16.msra.mxu0 %v1515
    %1558 = vmatprep.subr.bf16.mxu0 0
    %1559 = vmatpush1.bf16.msra.mxu0 %v1514
    %1560 = vmatprep.subr.bf16.mxu0 0
    %1561 = vmatpush1.bf16.msra.mxu0 %v1513
    %1562 = vmatprep.subr.bf16.mxu0 0
    %1563 = vmatpush1.bf16.msra.mxu0 %v1512
    %1564 = vmatprep.subr.bf16.mxu0 0
    %1565 = vmatpush1.bf16.msra.mxu0 %v1511
    %1566 = vmatprep.subr.bf16.mxu0 0
    %1567 = vmatpush1.bf16.msra.mxu0 %v1510
    %1568 = vmatprep.subr.bf16.mxu0 0
    %1569 = vmatpush1.bf16.msra.mxu0 %v1509
    %1570 = vmatprep.subr.bf16.mxu0 0
    %1571 = vmatpush1.bf16.msra.mxu0 %v1508
    %1572 = vmatprep.subr.bf16.mxu0 0
    %1573 = vmatpush2.bf16.msra.mxu0 %v1523
    %1574 = vmatprep.subr.bf16.mxu0 0
    %1575 = vmatpush2.bf16.msra.mxu0 %v1522
    %1576 = vmatprep.subr.bf16.mxu0 0
    %1577 = vmatpush2.bf16.msra.mxu0 %v1521
    %1578 = vmatprep.subr.bf16.mxu0 0
    %1579 = vmatpush2.bf16.msra.mxu0 %v1520
    %1580 = vmatprep.subr.bf16.mxu0 0
    %1581 = vmatpush2.bf16.msra.mxu0 %v1519
    %1582 = vmatprep.subr.bf16.mxu0 0
    %1583 = vmatpush2.bf16.msra.mxu0 %v1518
    %1584 = vmatprep.subr.bf16.mxu0 0
    %1585 = vmatpush2.bf16.msra.mxu0 %v1517
    %1586 = vmatprep.subr.bf16.mxu0 0
    %1587 = vmatpush2.bf16.msra.mxu0 %v1516
    %1588 = vmatprep.mubr.bf16.mxu0 %v1410
    %1589 = vmatmul.mubr.bf16.gmra.mxu0 %v1409
    %v1590 = vpop.f32.mrf.mxu0
    %v1591 = vadd.f32 0.0, %v1590
    %v1592 = vpop.f32.mrf.mxu0
    %v1593 = vpop.f32.mrf.mxu0
    %v1594 = vadd.f32 0.0, %v1593
    %v1595 = vpop.f32.mrf.mxu0
    %1596 = vdwg.mxu0
    %1597 = vmatprep.subr.bf16.mxu0 0
    %1598 = vmatpush1.bf16.msra.mxu0 %v1531
    %1599 = vmatprep.subr.bf16.mxu0 0
    %1600 = vmatpush1.bf16.msra.mxu0 %v1530
    %1601 = vmatprep.subr.bf16.mxu0 0
    %1602 = vmatpush1.bf16.msra.mxu0 %v1529
    %1603 = vmatprep.subr.bf16.mxu0 0
    %1604 = vmatpush1.bf16.msra.mxu0 %v1528
    %1605 = vmatprep.subr.bf16.mxu0 0
    %1606 = vmatpush1.bf16.msra.mxu0 %v1527
    %1607 = vmatprep.subr.bf16.mxu0 0
    %1608 = vmatpush1.bf16.msra.mxu0 %v1526
    %1609 = vmatprep.subr.bf16.mxu0 0
    %1610 = vmatpush1.bf16.msra.mxu0 %v1525
    %1611 = vmatprep.subr.bf16.mxu0 0
    %1612 = vmatpush1.bf16.msra.mxu0 %v1524
    %1613 = vmatprep.subr.bf16.mxu0 0
    %1614 = vmatpush2.bf16.msra.mxu0 0
    %1615 = vmatprep.subr.bf16.mxu0 0
    %1616 = vmatpush2.bf16.msra.mxu0 0
    %1617 = vmatprep.subr.bf16.mxu0 0
    %1618 = vmatpush2.bf16.msra.mxu0 0
    %1619 = vmatprep.subr.bf16.mxu0 0
    %1620 = vmatpush2.bf16.msra.mxu0 0
    %1621 = vmatprep.subr.bf16.mxu0 0
    %1622 = vmatpush2.bf16.msra.mxu0 0
    %1623 = vmatprep.subr.bf16.mxu0 0
    %1624 = vmatpush2.bf16.msra.mxu0 0
    %1625 = vmatprep.subr.bf16.mxu0 0
    %1626 = vmatpush2.bf16.msra.mxu0 0
    %1627 = vmatprep.subr.bf16.mxu0 0
    %1628 = vmatpush2.bf16.msra.mxu0 0
    %1629 = vmatprep.mubr.bf16.mxu0 0
    %1630 = vmatmul.mubr.bf16.gmra.mxu0 %v1411
    %v1631 = vpop.f32.mrf.mxu0
    %v1632 = vadd.f32 %v1591, %v1631
    %v1633 = vpop.f32.mrf.mxu0
    %v1634 = vpop.f32.mrf.mxu0
    %v1635 = vadd.f32 %v1594, %v1634
    %v1636 = vpop.f32.mrf.mxu0
    %1637 = vdwg.mxu0
    %v1638 = vadd.f32 %v871, %v1632
    %v1639 = vadd.f32 %v872, %v1635
    %1640 = vst [vmem:[#allocation14] sm:$0xff] %v1638
    %1641 = vst [vmem:[#allocation14 + $0x8] sm:$0xff] %v1639
    // Predicated region
    $region50: #{tpu_custom_call.1} parent=1 // pred_check
      _
    $region51: #{tpu_custom_call.1} parent=1 // pred_check_branch
      %1643 = sbr.rel (0) target = $region53
    $region52: #{tpu_custom_call.1} parent=1 // pred_region
      %s1645 = ssub.s32 256, 256
      %1646 = vsyncadd [#allocation7], %s1645
      %s1647 = sshll.u32 [#allocation14], 4
      %s1648 = int_to_ptr.vmem [resolvable:$true] %s1647
      %1653 = dma.vmem_to_hbm [thread:$0]  %s1648, 256, %s7, [#allocation7], 128, 128, 8
    $region53: #{tpu_custom_call.1} parent=1 // pred_fallthru
      _
    // Predicated region
    $region54: #{tpu_custom_call.1} parent=1 // pred_check
      _
    $region55: #{tpu_custom_call.1} parent=1 // pred_check_branch
      %1655 = sbr.rel (0) target = $region57
    $region56: #{tpu_custom_call.1} parent=1 // pred_region
      %1656 = dma.done [#allocation7], 256
    $region57: #{tpu_custom_call.1} parent=1 // pred_fallthru
      _
    %1657 = vsyncpa [#allocation6], 1
    %1658 = vsyncpa [#allocation9], 1
    %1659 = vsyncpa [#allocation12], 1
    %1660 = vsyncpa [#allocation7], 1
  %1661 = vsyncmov [#allocation4]
  %s1662 = vpop.sfrf %1661
  %p1663 = scmp.eq.s32.totalorder %s1662, 0
  %p1664 = pneg %p1663
  %1666 = shalt.err (%p1664)
  %s1667 = scalar_lea.sflag [#allocation4], 1
  %1668 = vsyncmov %s1667
  %s1669 = vpop.sfrf %1668
  %p1670 = scmp.eq.s32.totalorder %s1669, 0
  %p1671 = pneg %p1670
  %1673 = shalt.err (%p1671)

</llo_original>
